<compile_context>
chip_gen: v5e
topology: v5e:2x2
jax: 0.10.0
libtpu: 0.0.40
codegen_flags: <defaults>
</compile_context>

<pallas_src>
import functools

import jax
import jax.numpy as jnp
from jax.experimental import pallas as pl
from jax.experimental.pallas import tpu as pltpu


def act_kernel(*args, num_steps, p_max):
    """One grid step processes a (tm, D) tile of rows for all `num_steps` states.

    args layout:
      x_refs[0..S-1] : (tm, D)  stacked hidden atom states (one ref per step)
      e_ref          : (tm, D)  atomic environment embedding
      w_ref          : (1, D)   fused ponder weight row  (W1 @ W2, lane-dense)
      b_ref          : (1,)     fused ponder bias scalar (SMEM)
      o_ref          : (tm, D)  output
    """
    x_refs = args[:num_steps]
    e_ref, w_ref, b_ref, o_ref = args[num_steps:num_steps + 4]

    rows, d = e_ref.shape
    b_eff = b_ref[0]                                            # scalar (SMEM)

    # Hoist ONE tile-shaped broadcast of the fused weight row; reused by every projection
    # below (JAX does not CSE broadcast_in_dim — per-use broadcasts would blow up vreg/VMEM
    # temp pressure at large tm).
    w_b = jnp.broadcast_to(w_ref[...].astype(jnp.float32), (rows, d))   # (tm, D)

    # Project e once per tile: VPU mul + XLU lane reduce (no MXU, no hxe tensor).
    e = e_ref[...].astype(jnp.float32)                           # (tm, D)
    e_dot = jnp.sum(e * w_b, axis=-1, keepdims=True) + b_eff     # (tm, 1)

    ps = []
    accum_p = jnp.zeros((rows, 1), jnp.float32)                  # running sum of halting probs

    # Halting-probability recurrence (sequential over steps; S is small/static -> unrolled).
    for s in range(num_steps - 1):
        x = x_refs[s][...].astype(jnp.float32)                   # (tm, D)
        z = jnp.sum(x * w_b, axis=-1, keepdims=True) + e_dot     # fused Linear-Linear score
        h = jax.nn.sigmoid(z)
        accum_p_sum = accum_p + h
        p = h - jnp.maximum(accum_p_sum - p_max, 0.0)
        ps.append(p)
        accum_p = accum_p + p

    # Remainder probability for the last step.
    ps.append(jnp.maximum(p_max - accum_p, 0.0))

    # Sharpen: exact integer power 5 (p*p -> ^2 -> *p), normalized over steps.
    sp = []
    for p in ps:
        p2 = p * p
        p4 = p2 * p2
        sp.append(p4 * p)
    denom = sp[0]
    for s in range(1, num_steps):
        denom = denom + sp[s]
    inv_denom = pl.reciprocal(denom, approx=False)               # (tm, 1); exact, cheap

    # Weighted sum of the stacked states (x tiles re-read from VMEM, not HBM).
    out = x_refs[0][...].astype(jnp.float32) * (sp[0] * inv_denom)
    for s in range(1, num_steps):
        out = out + x_refs[s][...].astype(jnp.float32) * (sp[s] * inv_denom)

    o_ref[...] = out.astype(o_ref.dtype)


def _round_up(x, m):
    return (x + m - 1) // m * m


def _round_down(x, m):
    return (x // m) * m


def _select_tile(M, D, S, itemsize, vmem_budget_bytes, tm_cap=4096, min_tiles=4, gran=16):
    """Pick the row-tile size from a VMEM budget for this pure-streaming kernel.

    Per row of tile, VMEM holds: double-buffered (S+1) input streams + 1 double-buffered
    output stream in the I/O dtype, plus ~4 f32 row-tiles of in-kernel temps (w broadcast,
    f32 casts of x/e, the f32 out accumulator).
    """
    per_row_bytes = D * (2 * (S + 1) * itemsize + 2 * itemsize + 4 * 4)
    tm = max(gran, vmem_budget_bytes // per_row_bytes)
    tm = _round_down(min(tm, tm_cap, _round_up(M, gran)), gran)
    tm = max(tm, gran)
    # Keep at least `min_tiles` grid steps when rows allow it: hides writeback / pipeline
    # fill+drain and gives each v7x TensorCore >= 2 tiles on the parallel axis.
    if M >= min_tiles * gran:
        tm = min(tm, max(gran, _round_down(M // min_tiles, gran)))
    return tm


def adaptive_computation_time(xs, e, w1, b1, w2, b2, *, epsilon=0.01,
                              vmem_budget_bytes=32 << 20):
    """xs: list of (N_b, N_a, D); e: (N_b, N_a, D). Returns (N_b, N_a, D).

    xs / e may be f32 or bf16; all internal math is f32 and the output matches the
    input dtype (no wrapper-side casts — HBM bytes are the binding resource).
    """
    S = len(xs)
    N_b, N_a, D = xs[0].shape
    M = N_b * N_a
    dtype = xs[0].dtype
    itemsize = jnp.dtype(dtype).itemsize

    # Fuse the two un-activated Linear layers (exact, done in f32):
    #   (x + e) @ W1 @ W2 + (b1 @ W2 + b2) = x @ w_eff + e @ w_eff + b_eff
    w1f = w1.astype(jnp.float32)
    w2f = w2.astype(jnp.float32)
    w_eff = (w1f @ w2f).reshape(1, D)                                            # (1, D)
    b_eff = (b1.astype(jnp.float32) @ w2f + b2.astype(jnp.float32)).reshape(1)   # (1,)

    # Tile selection from the VMEM budget (not a fixed constant).
    tm = _select_tile(M, D, S, itemsize, vmem_budget_bytes)

    # Pad rows to a multiple of tm: rows are independent, padded (zero) rows are harmless
    # (their halting probs are finite and denom > 0), and they're sliced off at the end.
    M_pad = _round_up(M, tm)
    xs_flat = [x.reshape(M, D) for x in xs]        # free reshapes, no stacking copy
    e_flat = e.reshape(M, D)
    if M_pad != M:
        pad = M_pad - M
        xs_flat = [jnp.pad(x, ((0, pad), (0, 0))) for x in xs_flat]
        e_flat = jnp.pad(e_flat, ((0, pad), (0, 0)))
    grid = M_pad // tm

    # Scoped-VMEM limit: estimated usage at this tile + 25% headroom, within the 16 MiB
    # v5e scoped default .. 64 MiB v7x physical range.
    est_vmem = (tm * D * (2 * (S + 1) * itemsize + 2 * itemsize)   # pipeline buffers
                + 4 * tm * D * 4                                   # f32 in-kernel temps
                + D * 4 + 1024)                                    # w_eff row + slack
    vmem_limit = int(min(56 << 20, max(32 << 20, est_vmem * 5 // 4)))

    kernel = functools.partial(act_kernel, num_steps=S, p_max=1.0 - epsilon)

    x_specs = [pl.BlockSpec((tm, D), lambda i: (i, 0)) for _ in range(S)]

    cost = pl.CostEstimate(
        flops=4 * S * M_pad * D,                   # projections + weighted-sum epilogue
        transcendentals=S * M_pad,                 # sigmoids + reciprocal
        bytes_accessed=(S + 2) * M_pad * D * itemsize + (D + 1) * 4,
    )

    out_flat = pl.pallas_call(
        kernel,
        out_shape=jax.ShapeDtypeStruct((M_pad, D), dtype),
        grid_spec=pltpu.PrefetchScalarGridSpec(
            num_scalar_prefetch=0,
            grid=(grid,),
            in_specs=x_specs + [
                pl.BlockSpec((tm, D), lambda i: (i, 0)),                   # e tile
                pl.BlockSpec((1, D), lambda i: (0, 0)),                    # w_eff (replicated)
                pl.BlockSpec(memory_space=pltpu.MemorySpace.SMEM),         # b_eff scalar
            ],
            out_specs=pl.BlockSpec((tm, D), lambda i: (i, 0)),
        ),
        compiler_params=pltpu.CompilerParams(
            dimension_semantics=("parallel",),
            vmem_limit_bytes=vmem_limit,
        ),
        cost_estimate=cost,
    )(*xs_flat, e_flat, w_eff, b_eff)

    if M_pad != M:
        out_flat = out_flat[:M]
    return out_flat.reshape(N_b, N_a, D)


def reference_act(xs, e, w1, b1, w2, b2, *, epsilon=0.01, sharpen_power=5.0):
    """Pure-JAX reference matching the PyTorch forward exactly (unfused)."""
    p_max = 1.0 - epsilon
    S = len(xs)
    accum_p = []
    for i in range(S):
        if i < S - 1:
            hxe = (xs[i] + e).astype(jnp.float32)
            z = (hxe @ w1 + b1.reshape(1, 1, -1)) @ w2 + b2.reshape(1, 1, 1)
            h = jax.nn.sigmoid(z)                                  # (N_b, N_a, 1)
            s = sum(accum_p) + h if accum_p else h
            p = h - jax.nn.relu(s - p_max)
            accum_p.append(p)
        else:
            s = sum(accum_p) if accum_p else 0.0
            accum_p.append(jax.nn.relu(p_max - s))
    p_tensor = jnp.concatenate(accum_p, axis=-1)[..., None]        # (N_b, N_a, S, 1)
    sp = p_tensor ** sharpen_power
    sp = sp / jnp.sum(sp, axis=-2, keepdims=True)
    x_expand = jnp.stack([x.astype(jnp.float32) for x in xs], axis=-2)   # (N_b,N_a,S,D)
    return jnp.sum(x_expand * sp, axis=-2)


def _run_case(key, N_b, N_a, n_atom_basis, n_hidden, act_steps):
    keys = jax.random.split(key, act_steps + 5)
    xs = [jax.random.normal(keys[i], (N_b, N_a, n_atom_basis), dtype=jnp.float32)
          for i in range(act_steps)]
    e = jax.random.normal(keys[act_steps], (N_b, N_a, n_atom_basis), dtype=jnp.float32)

    # Deterministic ponder_net parameters (Dense(n_atom_basis->n_hidden), Dense(n_hidden->1)).
    w1 = jax.random.normal(keys[act_steps + 1], (n_atom_basis, n_hidden),
                           dtype=jnp.float32) * (1.0 / jnp.sqrt(n_atom_basis))
    b1 = jax.random.normal(keys[act_steps + 2], (n_hidden,), dtype=jnp.float32) * 0.01
    w2 = jax.random.normal(keys[act_steps + 3], (n_hidden, 1),
                           dtype=jnp.float32) * (1.0 / jnp.sqrt(n_hidden))
    b2 = jax.random.normal(keys[act_steps + 4], (1,), dtype=jnp.float32) * 0.01

    out = adaptive_computation_time(xs, e, w1, b1, w2, b2)
    out = jax.block_until_ready(out)

    ref = reference_act(xs, e, w1, b1, w2, b2)
    assert out.shape == (N_b, N_a, n_atom_basis)
    assert jnp.allclose(out, ref, atol=1e-4, rtol=1e-4), "mismatch vs pure-JAX reference"


if __name__ == "__main__":
    key = jax.random.PRNGKey(0)
    k1, k2 = jax.random.split(key)

    # Case 1: tile-friendly rows (256 rows -> grid of 4 tiles of 64 rows).
    _run_case(k1, N_b=2, N_a=128, n_atom_basis=128, n_hidden=128, act_steps=4)
    # Case 2: ragged row count (200 rows) -> exercises the pad-to-tile path.
    _run_case(k2, N_b=2, N_a=100, n_atom_basis=128, n_hidden=64, act_steps=3)

    print("KERNEL_OK")
</pallas_src>

<mosaic_0001>
module attributes {stable_mosaic.version = 11 : i64} {
  func.func @act_kernel(%arg0: i32, %arg1: memref<64x128xf32, #tpu.memory_space<vmem>>, %arg2: memref<64x128xf32, #tpu.memory_space<vmem>>, %arg3: memref<64x128xf32, #tpu.memory_space<vmem>>, %arg4: memref<64x128xf32, #tpu.memory_space<vmem>>, %arg5: memref<64x128xf32, #tpu.memory_space<vmem>>, %arg6: memref<1x128xf32, #tpu.memory_space<vmem>>, %arg7: memref<1xf32, #tpu.memory_space<smem>>, %arg8: memref<64x128xf32, #tpu.memory_space<vmem>>) attributes {dimension_semantics = [#tpu.dimension_semantics<parallel>], iteration_bounds = array<i64: 4>, scalar_prefetch = 0 : i64, scratch_operands = 0 : i64, tpu.core_type = #tpu.core_type<tc>, window_params = [{transform_indices = @transform_0, window_bounds = array<i64: 64, 128>}, {transform_indices = @transform_1, window_bounds = array<i64: 64, 128>}, {transform_indices = @transform_2, window_bounds = array<i64: 64, 128>}, {transform_indices = @transform_3, window_bounds = array<i64: 64, 128>}, {transform_indices = @transform_4, window_bounds = array<i64: 64, 128>}, {pipeline_mode = #tpu.pipeline_mode<synchronous>, transform_indices = @transform_5, window_bounds = array<i64: 1, 128>}, {transform_indices = @transform_6, window_bounds = array<i64: 1>}, {transform_indices = @transform_7, window_bounds = array<i64: 64, 128>}]} {
    %c0 = arith.constant 0 : index
    %0 = memref.load %arg7[%c0] : memref<1xf32, #tpu.memory_space<smem>>
    %c0_0 = arith.constant 0 : index
    %c0_1 = arith.constant 0 : index
    %1 = vector.load %arg6[%c0_0, %c0_1] : memref<1x128xf32, #tpu.memory_space<vmem>>, vector<1x128xf32>
    %2 = vector.shape_cast %1 : vector<1x128xf32> to vector<1x128xf32>
    %3 = vector.broadcast %2 : vector<1x128xf32> to vector<64x128xf32>
    %c0_2 = arith.constant 0 : index
    %c0_3 = arith.constant 0 : index
    %4 = vector.load %arg5[%c0_2, %c0_3] : memref<64x128xf32, #tpu.memory_space<vmem>>, vector<64x128xf32>
    %5 = arith.mulf %4, %3 : vector<64x128xf32>
    %cst = arith.constant dense<0.000000e+00> : vector<64xf32>
    %6 = vector.multi_reduction <add>, %5, %cst [1] : vector<64x128xf32> to vector<64xf32>
    %7 = vector.shape_cast %6 : vector<64xf32> to vector<64x1xf32>
    %8 = vector.broadcast %0 : f32 to vector<64x1xf32>
    %9 = arith.addf %7, %8 : vector<64x1xf32>
    %cst_4 = arith.constant 0.000000e+00 : f32
    %10 = vector.broadcast %cst_4 : f32 to vector<64x1xf32>
    %c0_5 = arith.constant 0 : index
    %c0_6 = arith.constant 0 : index
    %11 = vector.load %arg1[%c0_5, %c0_6] : memref<64x128xf32, #tpu.memory_space<vmem>>, vector<64x128xf32>
    %12 = arith.mulf %11, %3 : vector<64x128xf32>
    %cst_7 = arith.constant dense<0.000000e+00> : vector<64xf32>
    %13 = vector.multi_reduction <add>, %12, %cst_7 [1] : vector<64x128xf32> to vector<64xf32>
    %14 = vector.shape_cast %13 : vector<64xf32> to vector<64x1xf32>
    %15 = arith.addf %14, %9 : vector<64x1xf32>
    %16 = arith.negf %15 : vector<64x1xf32>
    %17 = math.exp %16 : vector<64x1xf32>
    %cst_8 = arith.constant 1.000000e+00 : f32
    %18 = vector.broadcast %cst_8 : f32 to vector<64x1xf32>
    %19 = arith.addf %18, %17 : vector<64x1xf32>
    %20 = arith.divf %18, %19 : vector<64x1xf32>
    %21 = arith.addf %10, %20 : vector<64x1xf32>
    %cst_9 = arith.constant 9.900000e-01 : f32
    %22 = vector.broadcast %cst_9 : f32 to vector<64x1xf32>
    %23 = arith.subf %21, %22 : vector<64x1xf32>
    %cst_10 = arith.constant 0.000000e+00 : f32
    %24 = vector.broadcast %cst_10 : f32 to vector<64x1xf32>
    %25 = arith.maximumf %23, %24 : vector<64x1xf32>
    %26 = arith.subf %20, %25 : vector<64x1xf32>
    %27 = arith.addf %10, %26 : vector<64x1xf32>
    %c0_11 = arith.constant 0 : index
    %c0_12 = arith.constant 0 : index
    %28 = vector.load %arg2[%c0_11, %c0_12] : memref<64x128xf32, #tpu.memory_space<vmem>>, vector<64x128xf32>
    %29 = arith.mulf %28, %3 : vector<64x128xf32>
    %cst_13 = arith.constant dense<0.000000e+00> : vector<64xf32>
    %30 = vector.multi_reduction <add>, %29, %cst_13 [1] : vector<64x128xf32> to vector<64xf32>
    %31 = vector.shape_cast %30 : vector<64xf32> to vector<64x1xf32>
    %32 = arith.addf %31, %9 : vector<64x1xf32>
    %33 = arith.negf %32 : vector<64x1xf32>
    %34 = math.exp %33 : vector<64x1xf32>
    %cst_14 = arith.constant 1.000000e+00 : f32
    %35 = vector.broadcast %cst_14 : f32 to vector<64x1xf32>
    %36 = arith.addf %35, %34 : vector<64x1xf32>
    %37 = arith.divf %35, %36 : vector<64x1xf32>
    %38 = arith.addf %27, %37 : vector<64x1xf32>
    %cst_15 = arith.constant 9.900000e-01 : f32
    %39 = vector.broadcast %cst_15 : f32 to vector<64x1xf32>
    %40 = arith.subf %38, %39 : vector<64x1xf32>
    %cst_16 = arith.constant 0.000000e+00 : f32
    %41 = vector.broadcast %cst_16 : f32 to vector<64x1xf32>
    %42 = arith.maximumf %40, %41 : vector<64x1xf32>
    %43 = arith.subf %37, %42 : vector<64x1xf32>
    %44 = arith.addf %27, %43 : vector<64x1xf32>
    %c0_17 = arith.constant 0 : index
    %c0_18 = arith.constant 0 : index
    %45 = vector.load %arg3[%c0_17, %c0_18] : memref<64x128xf32, #tpu.memory_space<vmem>>, vector<64x128xf32>
    %46 = arith.mulf %45, %3 : vector<64x128xf32>
    %cst_19 = arith.constant dense<0.000000e+00> : vector<64xf32>
    %47 = vector.multi_reduction <add>, %46, %cst_19 [1] : vector<64x128xf32> to vector<64xf32>
    %48 = vector.shape_cast %47 : vector<64xf32> to vector<64x1xf32>
    %49 = arith.addf %48, %9 : vector<64x1xf32>
    %50 = arith.negf %49 : vector<64x1xf32>
    %51 = math.exp %50 : vector<64x1xf32>
    %cst_20 = arith.constant 1.000000e+00 : f32
    %52 = vector.broadcast %cst_20 : f32 to vector<64x1xf32>
    %53 = arith.addf %52, %51 : vector<64x1xf32>
    %54 = arith.divf %52, %53 : vector<64x1xf32>
    %55 = arith.addf %44, %54 : vector<64x1xf32>
    %cst_21 = arith.constant 9.900000e-01 : f32
    %56 = vector.broadcast %cst_21 : f32 to vector<64x1xf32>
    %57 = arith.subf %55, %56 : vector<64x1xf32>
    %cst_22 = arith.constant 0.000000e+00 : f32
    %58 = vector.broadcast %cst_22 : f32 to vector<64x1xf32>
    %59 = arith.maximumf %57, %58 : vector<64x1xf32>
    %60 = arith.subf %54, %59 : vector<64x1xf32>
    %61 = arith.addf %44, %60 : vector<64x1xf32>
    %cst_23 = arith.constant 9.900000e-01 : f32
    %62 = vector.broadcast %cst_23 : f32 to vector<64x1xf32>
    %63 = arith.subf %62, %61 : vector<64x1xf32>
    %cst_24 = arith.constant 0.000000e+00 : f32
    %64 = vector.broadcast %cst_24 : f32 to vector<64x1xf32>
    %65 = arith.maximumf %63, %64 : vector<64x1xf32>
    %66 = arith.mulf %26, %26 : vector<64x1xf32>
    %67 = arith.mulf %66, %66 : vector<64x1xf32>
    %68 = arith.mulf %67, %26 : vector<64x1xf32>
    %69 = arith.mulf %43, %43 : vector<64x1xf32>
    %70 = arith.mulf %69, %69 : vector<64x1xf32>
    %71 = arith.mulf %70, %43 : vector<64x1xf32>
    %72 = arith.mulf %60, %60 : vector<64x1xf32>
    %73 = arith.mulf %72, %72 : vector<64x1xf32>
    %74 = arith.mulf %73, %60 : vector<64x1xf32>
    %75 = arith.mulf %65, %65 : vector<64x1xf32>
    %76 = arith.mulf %75, %75 : vector<64x1xf32>
    %77 = arith.mulf %76, %65 : vector<64x1xf32>
    %78 = arith.addf %68, %71 : vector<64x1xf32>
    %79 = arith.addf %78, %74 : vector<64x1xf32>
    %80 = arith.addf %79, %77 : vector<64x1xf32>
    %81 = tpu.reciprocal %80 : vector<64x1xf32> -> vector<64x1xf32>
    %c0_25 = arith.constant 0 : index
    %c0_26 = arith.constant 0 : index
    %82 = vector.load %arg1[%c0_25, %c0_26] : memref<64x128xf32, #tpu.memory_space<vmem>>, vector<64x128xf32>
    %83 = arith.mulf %68, %81 : vector<64x1xf32>
    %84 = vector.broadcast %83 : vector<64x1xf32> to vector<64x128xf32>
    %85 = arith.mulf %82, %84 : vector<64x128xf32>
    %c0_27 = arith.constant 0 : index
    %c0_28 = arith.constant 0 : index
    %86 = vector.load %arg2[%c0_27, %c0_28] : memref<64x128xf32, #tpu.memory_space<vmem>>, vector<64x128xf32>
    %87 = arith.mulf %71, %81 : vector<64x1xf32>
    %88 = vector.broadcast %87 : vector<64x1xf32> to vector<64x128xf32>
    %89 = arith.mulf %86, %88 : vector<64x128xf32>
    %90 = arith.addf %85, %89 : vector<64x128xf32>
    %c0_29 = arith.constant 0 : index
    %c0_30 = arith.constant 0 : index
    %91 = vector.load %arg3[%c0_29, %c0_30] : memref<64x128xf32, #tpu.memory_space<vmem>>, vector<64x128xf32>
    %92 = arith.mulf %74, %81 : vector<64x1xf32>
    %93 = vector.broadcast %92 : vector<64x1xf32> to vector<64x128xf32>
    %94 = arith.mulf %91, %93 : vector<64x128xf32>
    %95 = arith.addf %90, %94 : vector<64x128xf32>
    %c0_31 = arith.constant 0 : index
    %c0_32 = arith.constant 0 : index
    %96 = vector.load %arg4[%c0_31, %c0_32] : memref<64x128xf32, #tpu.memory_space<vmem>>, vector<64x128xf32>
    %97 = arith.mulf %77, %81 : vector<64x1xf32>
    %98 = vector.broadcast %97 : vector<64x1xf32> to vector<64x128xf32>
    %99 = arith.mulf %96, %98 : vector<64x128xf32>
    %100 = arith.addf %95, %99 : vector<64x128xf32>
    %c0_33 = arith.constant 0 : index
    %c0_34 = arith.constant 0 : index
    %101 = vector.load %arg8[%c0_33, %c0_34] : memref<64x128xf32, #tpu.memory_space<vmem>>, vector<64x128xf32>
    tpu.vector_store %arg8[%c0_33, %c0_34], %100 {strides = array<i32>} : memref<64x128xf32, #tpu.memory_space<vmem>>, vector<64x128xf32>,
    return
  }
  func.func @transform_0(%arg0: i32) -> (i32, i32) {
    %c0_i32 = arith.constant 0 : i32
    %c0_i32_0 = arith.constant 0 : i32
    return %arg0, %c0_i32 : i32, i32
  }
  func.func @transform_1(%arg0: i32) -> (i32, i32) {
    %c0_i32 = arith.constant 0 : i32
    %c0_i32_0 = arith.constant 0 : i32
    return %arg0, %c0_i32 : i32, i32
  }
  func.func @transform_2(%arg0: i32) -> (i32, i32) {
    %c0_i32 = arith.constant 0 : i32
    %c0_i32_0 = arith.constant 0 : i32
    return %arg0, %c0_i32 : i32, i32
  }
  func.func @transform_3(%arg0: i32) -> (i32, i32) {
    %c0_i32 = arith.constant 0 : i32
    %c0_i32_0 = arith.constant 0 : i32
    return %arg0, %c0_i32 : i32, i32
  }
  func.func @transform_4(%arg0: i32) -> (i32, i32) {
    %c0_i32 = arith.constant 0 : i32
    %c0_i32_0 = arith.constant 0 : i32
    return %arg0, %c0_i32 : i32, i32
  }
  func.func @transform_5(%arg0: i32) -> (i32, i32) {
    %c0_i32 = arith.constant 0 : i32
    %c0_i32_0 = arith.constant 0 : i32
    %c0_i32_1 = arith.constant 0 : i32
    return %c0_i32, %c0_i32_0 : i32, i32
  }
  func.func @transform_6(%arg0: i32) -> i32 {
    %c0_i32 = arith.constant 0 : i32
    %c0_i32_0 = arith.constant 0 : i32
    return %c0_i32 : i32
  }
  func.func @transform_7(%arg0: i32) -> (i32, i32) {
    %c0_i32 = arith.constant 0 : i32
    %c0_i32_0 = arith.constant 0 : i32
    return %arg0, %c0_i32 : i32, i32
  }
}

</mosaic_0001>

<llo_original>
// kernel: tpu_custom_call.1
$region0: #{tpu_custom_call.1}
  #allocation0 [shape = 'u32[]', space=smem, size = 0x4, offset = 0x4, fixed_abs, tag = 'smem constant byte address 0x4 - core index']
  #allocation1 [shape = 'u32[72,128]{1,0:T(1,128)}', space=vmem, size = 0x9000, scoped, tag = 'internal scratch']
  #allocation2 [shape = 'f32[1]{0:T(128)S(6)}', space=smem, size = 0x200, scoped, tag = 'scoped memory for tpu_custom_call.1']
  %s0 = inlined_call_operand.hbm [shape: f32[256,128], index: 0, kind: input, shape index: {}]
  %s1 = inlined_call_operand.hbm [shape: f32[256,128], index: 1, kind: input, shape index: {}]
  %s2 = inlined_call_operand.hbm [shape: f32[256,128], index: 2, kind: input, shape index: {}]
  %s3 = inlined_call_operand.hbm [shape: f32[256,128], index: 3, kind: input, shape index: {}]
  %s4 = inlined_call_operand.hbm [shape: f32[256,128], index: 4, kind: input, shape index: {}]
  %s5 = inlined_call_operand.vmem [shape: f32[1,128], index: 5, kind: input, shape index: {}]
  %s6 = inlined_call_operand.<no memory space> [shape: f32[1], index: 6, kind: input, shape index: {}]
  %s7 = inlined_call_operand.hbm [shape: f32[256,128], index: 7, kind: output, shape index: {}]
  %s8 = sld [smem:[#allocation0]]
  $region81: #{tpu_custom_call.1} parent=0
    _
  %s10 = ssub.s32 1, %s8
  %s11 = scalar_select 0, %s10, %s8
  %12 = sst [smem:[#allocation2]] %s6
  $region1: #{tpu_custom_call.1} parent=0
    #allocation3 [shape = 'u8[65536]{0}', space=vmem, size = 0x10000, scoped, tag = 'input window, operand 0']
    #allocation4 [shape = 's32[2]{0}', space=sflag, size = 0x8, scoped, tag = 'scoped memory for tpu_custom_call.1']
    #allocation5 [shape = 's32[2]{0}', space=sflag, size = 0x8, scoped, tag = 'scoped memory for tpu_custom_call.1']
    #allocation6 [shape = 'u8[65536]{0}', space=vmem, size = 0x10000, scoped, tag = 'input window, operand 1']
    #allocation7 [shape = 's32[2]{0}', space=sflag, size = 0x8, scoped, tag = 'scoped memory for tpu_custom_call.1']
    #allocation8 [shape = 'u8[65536]{0}', space=vmem, size = 0x10000, scoped, tag = 'input window, operand 2']
    #allocation9 [shape = 'u8[65536]{0}', space=vmem, size = 0x10000, scoped, tag = 'input window, operand 3']
    #allocation10 [shape = 's32[2]{0}', space=sflag, size = 0x8, scoped, tag = 'scoped memory for tpu_custom_call.1']
    #allocation11 [shape = 'u8[65536]{0}', space=vmem, size = 0x10000, scoped, tag = 'input window, operand 4']
    #allocation12 [shape = 'u8[65536]{0}', space=vmem, size = 0x10000, scoped, tag = 'output window, operand 0']
    %13 = vsyncpa [#allocation4], 0
    %s14 = scalar_lea.sflag [#allocation4], 1
    %15 = vsyncpa %s14, 0
    %16 = vsyncpa [#allocation7], 0
    %s17 = scalar_lea.sflag [#allocation7], 1
    %18 = vsyncpa %s17, 0
    %19 = vsyncpa [#allocation10], 0
    %s20 = scalar_lea.sflag [#allocation10], 1
    %21 = vsyncpa %s20, 0
    %22 = vsyncpa [#allocation5], 0
    %s23 = scalar_lea.sflag [#allocation5], 1
    %24 = vsyncpa %s23, 0
    loop: start=0, step=1, limit=6
    $region2: #{tpu_custom_call.1} parent=1 // loop_pre_header
      _
    $region3: #{tpu_custom_call.1} parent=1 // loop_header
      %s26 = sphi 0, %s30
      %p27 = scmp.ge.s32.totalorder %s26, 6
      %s36 = sphi 0, %s38
      %s39 = sphi 0, %s36
      %s40 = sphi 0, %s39
      %s56 = sphi 0, %s40
      %s62 = sphi 0, %s64
      %s65 = sphi 0, %s62
      %s66 = sphi 0, %s65
      %s82 = sphi 0, %s66
      %s88 = sphi 0, %s90
      %s91 = sphi 0, %s88
      %s92 = sphi 0, %s91
      %s108 = sphi 0, %s92
      %s114 = sphi 0, %s116
      %s117 = sphi 0, %s114
      %s118 = sphi 0, %s117
      %s134 = sphi 0, %s118
      %s140 = sphi 0, %s142
      %s143 = sphi 0, %s140
      %s144 = sphi 0, %s143
      %s160 = sphi 0, %s144
      %s164 = sphi 0, %s164
      %s166 = sphi 0, %s164
      %s167 = sphi 0, %s166
      %s181 = sphi 0, %s167
      %s185 = sphi 0, %s185
      %s187 = sphi 0, %s185
      %s188 = sphi 0, %s187
      %s202 = sphi 0, %s188
      %s208 = sphi 0, %s210
      %s211 = sphi 0, %s208
      %s212 = sphi 0, %s211
      %s228 = sphi 0, %s212
    $region4: #{tpu_custom_call.1} parent=1 // loop_header_branch
      %29 = sbr.rel (%p27) target = $region8
    $region5: #{tpu_custom_call.1} parent=1 // loop_body
      %s31 = ssub.s32 %s26, 1
      %s32 = ssub.s32 %s26, 2
      %s33 = sadd.s32 %s26, 1
      %s34 = ssub.s32 %s26, %s33
      %p35 = scmp.eq.s32.totalorder %s34, 0
      %s37 = sadd.s32 %s36, 1
      %s38 = scalar_select %p35, %s36, %s37
      %p41 = pneg %p35
      %p42 = scmp.eq.s32.totalorder %s26, 3
      %p43 = por %p41, %p42
      %p44 = scmp.ne.s32.totalorder %s36, %s39
      %p45 = scmp.eq.s32.totalorder %s26, 0
      %p46 = por %p44, %p45
      %p47 = scmp.ne.s32.totalorder %s36, %s39
      %p48 = scmp.eq.s32.totalorder %s31, 3
      %p49 = por %p47, %p48
      %p50 = scmp.ne.s32.totalorder %s39, %s40
      %p51 = scmp.eq.s32.totalorder %s31, 0
      %p52 = por %p50, %p51
      %p53 = scmp.ne.s32.totalorder %s39, %s40
      %p54 = scmp.eq.s32.totalorder %s32, 3
      %p55 = por %p53, %p54
      %p57 = scmp.ne.s32.totalorder %s40, %s56
      %p58 = scmp.eq.s32.totalorder %s32, 0
      %p59 = por %p57, %p58
      %s60 = ssub.s32 %s26, %s33
      %p61 = scmp.eq.s32.totalorder %s60, 0
      %s63 = sadd.s32 %s62, 1
      %s64 = scalar_select %p61, %s62, %s63
      %p67 = pneg %p61
      %p68 = scmp.eq.s32.totalorder %s26, 3
      %p69 = por %p67, %p68
      %p70 = scmp.ne.s32.totalorder %s62, %s65
      %p71 = scmp.eq.s32.totalorder %s26, 0
      %p72 = por %p70, %p71
      %p73 = scmp.ne.s32.totalorder %s62, %s65
      %p74 = scmp.eq.s32.totalorder %s31, 3
      %p75 = por %p73, %p74
      %p76 = scmp.ne.s32.totalorder %s65, %s66
      %p77 = scmp.eq.s32.totalorder %s31, 0
      %p78 = por %p76, %p77
      %p79 = scmp.ne.s32.totalorder %s65, %s66
      %p80 = scmp.eq.s32.totalorder %s32, 3
      %p81 = por %p79, %p80
      %p83 = scmp.ne.s32.totalorder %s66, %s82
      %p84 = scmp.eq.s32.totalorder %s32, 0
      %p85 = por %p83, %p84
      %s86 = ssub.s32 %s26, %s33
      %p87 = scmp.eq.s32.totalorder %s86, 0
      %s89 = sadd.s32 %s88, 1
      %s90 = scalar_select %p87, %s88, %s89
      %p93 = pneg %p87
      %p94 = scmp.eq.s32.totalorder %s26, 3
      %p95 = por %p93, %p94
      %p96 = scmp.ne.s32.totalorder %s88, %s91
      %p97 = scmp.eq.s32.totalorder %s26, 0
      %p98 = por %p96, %p97
      %p99 = scmp.ne.s32.totalorder %s88, %s91
      %p100 = scmp.eq.s32.totalorder %s31, 3
      %p101 = por %p99, %p100
      %p102 = scmp.ne.s32.totalorder %s91, %s92
      %p103 = scmp.eq.s32.totalorder %s31, 0
      %p104 = por %p102, %p103
      %p105 = scmp.ne.s32.totalorder %s91, %s92
      %p106 = scmp.eq.s32.totalorder %s32, 3
      %p107 = por %p105, %p106
      %p109 = scmp.ne.s32.totalorder %s92, %s108
      %p110 = scmp.eq.s32.totalorder %s32, 0
      %p111 = por %p109, %p110
      %s112 = ssub.s32 %s26, %s33
      %p113 = scmp.eq.s32.totalorder %s112, 0
      %s115 = sadd.s32 %s114, 1
      %s116 = scalar_select %p113, %s114, %s115
      %p119 = pneg %p113
      %p120 = scmp.eq.s32.totalorder %s26, 3
      %p121 = por %p119, %p120
      %p122 = scmp.ne.s32.totalorder %s114, %s117
      %p123 = scmp.eq.s32.totalorder %s26, 0
      %p124 = por %p122, %p123
      %p125 = scmp.ne.s32.totalorder %s114, %s117
      %p126 = scmp.eq.s32.totalorder %s31, 3
      %p127 = por %p125, %p126
      %p128 = scmp.ne.s32.totalorder %s117, %s118
      %p129 = scmp.eq.s32.totalorder %s31, 0
      %p130 = por %p128, %p129
      %p131 = scmp.ne.s32.totalorder %s117, %s118
      %p132 = scmp.eq.s32.totalorder %s32, 3
      %p133 = por %p131, %p132
      %p135 = scmp.ne.s32.totalorder %s118, %s134
      %p136 = scmp.eq.s32.totalorder %s32, 0
      %p137 = por %p135, %p136
      %s138 = ssub.s32 %s26, %s33
      %p139 = scmp.eq.s32.totalorder %s138, 0
      %s141 = sadd.s32 %s140, 1
      %s142 = scalar_select %p139, %s140, %s141
      %p145 = pneg %p139
      %p146 = scmp.eq.s32.totalorder %s26, 3
      %p147 = por %p145, %p146
      %p148 = scmp.ne.s32.totalorder %s140, %s143
      %p149 = scmp.eq.s32.totalorder %s26, 0
      %p150 = por %p148, %p149
      %p151 = scmp.ne.s32.totalorder %s140, %s143
      %p152 = scmp.eq.s32.totalorder %s31, 3
      %p153 = por %p151, %p152
      %p154 = scmp.ne.s32.totalorder %s143, %s144
      %p155 = scmp.eq.s32.totalorder %s31, 0
      %p156 = por %p154, %p155
      %p157 = scmp.ne.s32.totalorder %s143, %s144
      %p158 = scmp.eq.s32.totalorder %s32, 3
      %p159 = por %p157, %p158
      %p161 = scmp.ne.s32.totalorder %s144, %s160
      %p162 = scmp.eq.s32.totalorder %s32, 0
      %p163 = por %p161, %p162
      %s165 = sadd.s32 %s164, 1
      %p168 = scmp.eq.s32.totalorder %s26, 3
      %p169 = scmp.ne.s32.totalorder %s164, %s166
      %p170 = scmp.eq.s32.totalorder %s26, 0
      %p171 = por %p169, %p170
      %p172 = scmp.ne.s32.totalorder %s164, %s166
      %p173 = scmp.eq.s32.totalorder %s31, 3
      %p174 = por %p172, %p173
      %p175 = scmp.ne.s32.totalorder %s166, %s167
      %p176 = scmp.eq.s32.totalorder %s31, 0
      %p177 = por %p175, %p176
      %p178 = scmp.ne.s32.totalorder %s166, %s167
      %p179 = scmp.eq.s32.totalorder %s32, 3
      %p180 = por %p178, %p179
      %p182 = scmp.ne.s32.totalorder %s167, %s181
      %p183 = scmp.eq.s32.totalorder %s32, 0
      %p184 = por %p182, %p183
      %s186 = sadd.s32 %s185, 1
      %p189 = scmp.eq.s32.totalorder %s26, 3
      %p190 = scmp.ne.s32.totalorder %s185, %s187
      %p191 = scmp.eq.s32.totalorder %s26, 0
      %p192 = por %p190, %p191
      %p193 = scmp.ne.s32.totalorder %s185, %s187
      %p194 = scmp.eq.s32.totalorder %s31, 3
      %p195 = por %p193, %p194
      %p196 = scmp.ne.s32.totalorder %s187, %s188
      %p197 = scmp.eq.s32.totalorder %s31, 0
      %p198 = por %p196, %p197
      %p199 = scmp.ne.s32.totalorder %s187, %s188
      %p200 = scmp.eq.s32.totalorder %s32, 3
      %p201 = por %p199, %p200
      %p203 = scmp.ne.s32.totalorder %s188, %s202
      %p204 = scmp.eq.s32.totalorder %s32, 0
      %p205 = por %p203, %p204
      %s206 = ssub.s32 %s26, %s33
      %p207 = scmp.eq.s32.totalorder %s206, 0
      %s209 = sadd.s32 %s208, 1
      %s210 = scalar_select %p207, %s208, %s209
      %p213 = pneg %p207
      %p214 = scmp.eq.s32.totalorder %s26, 3
      %p215 = por %p213, %p214
      %p216 = scmp.ne.s32.totalorder %s208, %s211
      %p217 = scmp.eq.s32.totalorder %s26, 0
      %p218 = por %p216, %p217
      %p219 = scmp.ne.s32.totalorder %s208, %s211
      %p220 = scmp.eq.s32.totalorder %s31, 3
      %p221 = por %p219, %p220
      %p222 = scmp.ne.s32.totalorder %s211, %s212
      %p223 = scmp.eq.s32.totalorder %s31, 0
      %p224 = por %p222, %p223
      %p225 = scmp.ne.s32.totalorder %s211, %s212
      %p226 = scmp.eq.s32.totalorder %s32, 3
      %p227 = por %p225, %p226
      %p229 = scmp.ne.s32.totalorder %s212, %s228
      %p230 = scmp.eq.s32.totalorder %s32, 0
      %p231 = por %p229, %p230
      %p232 = scmp.le.s32.totalorder 1, %s26
      %p233 = scmp.lt.s32.totalorder %s26, 5
      %p234 = pnand %p232, %p233
      %p235 = pneg %p234
      // Predicated region
      $region9: #{tpu_custom_call.1} parent=5 // pred_check
        _
      $region10: #{tpu_custom_call.1} parent=5 // pred_check_branch
        %237 = sbr.rel (%p234) target = $region12
      $region11: #{tpu_custom_call.1} parent=5 // pred_region
        %s238 = ssub.s32 %s26, 1
        // Predicated region
        $region13: #{tpu_custom_call.1} parent=11 // pred_check
          %p239 = pneg %p177
        $region14: #{tpu_custom_call.1} parent=11 // pred_check_branch
          %241 = sbr.rel (%p239) target = $region16
        $region15: #{tpu_custom_call.1} parent=11 // pred_region
          _
        $region16: #{tpu_custom_call.1} parent=11 // pred_fallthru
          _
        // Predicated region
        $region17: #{tpu_custom_call.1} parent=11 // pred_check
          %p242 = pneg %p198
        $region18: #{tpu_custom_call.1} parent=11 // pred_check_branch
          %244 = sbr.rel (%p242) target = $region20
        $region19: #{tpu_custom_call.1} parent=11 // pred_region
          _
        $region20: #{tpu_custom_call.1} parent=11 // pred_fallthru
          _
      $region12: #{tpu_custom_call.1} parent=5 // pred_fallthru
        _
      %p245 = scmp.lt.s32.totalorder %s26, 4
      // Predicated region
      $region21: #{tpu_custom_call.1} parent=5 // pred_check
        %p246 = pneg %p245
      $region22: #{tpu_custom_call.1} parent=5 // pred_check_branch
        %248 = sbr.rel (%p246) target = $region24
      $region23: #{tpu_custom_call.1} parent=5 // pred_region
        // Predicated region
        $region25: #{tpu_custom_call.1} parent=23 // pred_check
          %p249 = pneg %p46
        $region26: #{tpu_custom_call.1} parent=23 // pred_check_branch
          %251 = sbr.rel (%p249) target = $region28
        $region27: #{tpu_custom_call.1} parent=23 // pred_region
          %s252 = sand.u32 %s36, 1
          %s253 = scalar_lea.sflag [#allocation4], %s252
          %s254 = sand.u32 %s36, 1
          %s255 = smul.addr %s254, 64
          %s256 = scalar_lea.vmem [#allocation3], %s255
          %s257 = smul.u32 8, %s26
          %259 = vsyncadd %s253, 0
          %s260 = smul.addr %s257, 8
          %s261 = scalar_lea.hbm %s0, %s260
          %s262 = sshll.u32 %s261, 4
          %s263 = int_to_ptr.hbm [resolvable:$true] %s262
          %s264 = sshll.u32 %s256, 4
          %s265 = int_to_ptr.vmem [resolvable:$true] %s264
          %270 = dma.hbm_to_vmem [thread:$0]  %s263, 1024, %s265, %s253, 128, 128, 8
        $region28: #{tpu_custom_call.1} parent=23 // pred_fallthru
          _
        // Predicated region
        $region29: #{tpu_custom_call.1} parent=23 // pred_check
          %p271 = pneg %p72
        $region30: #{tpu_custom_call.1} parent=23 // pred_check_branch
          %273 = sbr.rel (%p271) target = $region32
        $region31: #{tpu_custom_call.1} parent=23 // pred_region
          %s274 = sand.u32 %s26, 1
          %s275 = scalar_lea.sflag [#allocation7], %s274
          %s276 = sand.u32 %s62, 1
          %s277 = smul.addr %s276, 64
          %s278 = scalar_lea.vmem [#allocation6], %s277
          %s279 = smul.u32 8, %s26
          %281 = vsyncadd %s275, 0
          %s282 = smul.addr %s279, 8
          %s283 = scalar_lea.hbm %s1, %s282
          %s284 = sshll.u32 %s283, 4
          %s285 = int_to_ptr.hbm [resolvable:$true] %s284
          %s286 = sshll.u32 %s278, 4
          %s287 = int_to_ptr.vmem [resolvable:$true] %s286
          %292 = dma.hbm_to_vmem [thread:$0]  %s285, 1024, %s287, %s275, 128, 128, 8
        $region32: #{tpu_custom_call.1} parent=23 // pred_fallthru
          _
        // Predicated region
        $region33: #{tpu_custom_call.1} parent=23 // pred_check
          %p293 = pneg %p98
        $region34: #{tpu_custom_call.1} parent=23 // pred_check_branch
          %295 = sbr.rel (%p293) target = $region36
        $region35: #{tpu_custom_call.1} parent=23 // pred_region
          %s296 = sand.u32 %s26, 1
          %s297 = scalar_lea.sflag [#allocation7], %s296
          %s298 = sand.u32 %s88, 1
          %s299 = smul.addr %s298, 64
          %s300 = scalar_lea.vmem [#allocation8], %s299
          %s301 = smul.u32 8, %s26
          %303 = vsyncadd %s297, 0
          %s304 = smul.addr %s301, 8
          %s305 = scalar_lea.hbm %s2, %s304
          %s306 = sshll.u32 %s305, 4
          %s307 = int_to_ptr.hbm [resolvable:$true] %s306
          %s308 = sshll.u32 %s300, 4
          %s309 = int_to_ptr.vmem [resolvable:$true] %s308
          %314 = dma.hbm_to_vmem [thread:$0]  %s307, 1024, %s309, %s297, 128, 128, 8
        $region36: #{tpu_custom_call.1} parent=23 // pred_fallthru
          _
        // Predicated region
        $region37: #{tpu_custom_call.1} parent=23 // pred_check
          %p315 = pneg %p124
        $region38: #{tpu_custom_call.1} parent=23 // pred_check_branch
          %317 = sbr.rel (%p315) target = $region40
        $region39: #{tpu_custom_call.1} parent=23 // pred_region
          %s318 = sand.u32 %s26, 1
          %s319 = scalar_lea.sflag [#allocation10], %s318
          %s320 = sand.u32 %s114, 1
          %s321 = smul.addr %s320, 64
          %s322 = scalar_lea.vmem [#allocation9], %s321
          %s323 = smul.u32 8, %s26
          %325 = vsyncadd %s319, 0
          %s326 = smul.addr %s323, 8
          %s327 = scalar_lea.hbm %s3, %s326
          %s328 = sshll.u32 %s327, 4
          %s329 = int_to_ptr.hbm [resolvable:$true] %s328
          %s330 = sshll.u32 %s322, 4
          %s331 = int_to_ptr.vmem [resolvable:$true] %s330
          %336 = dma.hbm_to_vmem [thread:$0]  %s329, 1024, %s331, %s319, 128, 128, 8
        $region40: #{tpu_custom_call.1} parent=23 // pred_fallthru
          _
        // Predicated region
        $region41: #{tpu_custom_call.1} parent=23 // pred_check
          %p337 = pneg %p150
        $region42: #{tpu_custom_call.1} parent=23 // pred_check_branch
          %339 = sbr.rel (%p337) target = $region44
        $region43: #{tpu_custom_call.1} parent=23 // pred_region
          %s340 = sand.u32 %s26, 1
          %s341 = scalar_lea.sflag [#allocation10], %s340
          %s342 = sand.u32 %s140, 1
          %s343 = smul.addr %s342, 64
          %s344 = scalar_lea.vmem [#allocation11], %s343
          %s345 = smul.u32 8, %s26
          %347 = vsyncadd %s341, 0
          %s348 = smul.addr %s345, 8
          %s349 = scalar_lea.hbm %s4, %s348
          %s350 = sshll.u32 %s349, 4
          %s351 = int_to_ptr.hbm [resolvable:$true] %s350
          %s352 = sshll.u32 %s344, 4
          %s353 = int_to_ptr.vmem [resolvable:$true] %s352
          %358 = dma.hbm_to_vmem [thread:$0]  %s351, 1024, %s353, %s341, 128, 128, 8
        $region44: #{tpu_custom_call.1} parent=23 // pred_fallthru
          _
      $region24: #{tpu_custom_call.1} parent=5 // pred_fallthru
        _
      %p359 = scmp.le.s32.totalorder 1, %s26
      %p360 = scmp.lt.s32.totalorder %s26, 5
      %p361 = pnand %p359, %p360
      %p362 = pneg %p361
      // Predicated region
      $region45: #{tpu_custom_call.1} parent=5 // pred_check
        _
      $region46: #{tpu_custom_call.1} parent=5 // pred_check_branch
        %364 = sbr.rel (%p361) target = $region48
      $region47: #{tpu_custom_call.1} parent=5 // pred_region
        %s365 = ssub.s32 %s26, 1
        %s366 = sand.u32 %s39, 1
        %s367 = scalar_lea.sflag [#allocation4], %s366
        %s368 = sand.u32 %s39, 1
        %s369 = smul.addr %s368, 64
        %s370 = scalar_lea.vmem [#allocation3], %s369
        // Predicated region
        $region49: #{tpu_custom_call.1} parent=47 // pred_check
          %p371 = pneg %p52
        $region50: #{tpu_custom_call.1} parent=47 // pred_check_branch
          %373 = sbr.rel (%p371) target = $region52
        $region51: #{tpu_custom_call.1} parent=47 // pred_region
          %375 = dma.done %s367, 1024
        $region52: #{tpu_custom_call.1} parent=47 // pred_fallthru
          _
        %s376 = sand.u32 %s31, 1
        %s377 = scalar_lea.sflag [#allocation7], %s376
        %s378 = sand.u32 %s65, 1
        %s379 = smul.addr %s378, 64
        %s380 = scalar_lea.vmem [#allocation6], %s379
        // Predicated region
        $region53: #{tpu_custom_call.1} parent=47 // pred_check
          %p381 = pneg %p78
        $region54: #{tpu_custom_call.1} parent=47 // pred_check_branch
          %383 = sbr.rel (%p381) target = $region56
        $region55: #{tpu_custom_call.1} parent=47 // pred_region
          %385 = dma.done %s377, 1024
        $region56: #{tpu_custom_call.1} parent=47 // pred_fallthru
          _
        %s386 = sand.u32 %s31, 1
        %s387 = scalar_lea.sflag [#allocation7], %s386
        %s388 = sand.u32 %s91, 1
        %s389 = smul.addr %s388, 64
        %s390 = scalar_lea.vmem [#allocation8], %s389
        // Predicated region
        $region57: #{tpu_custom_call.1} parent=47 // pred_check
          %p391 = pneg %p104
        $region58: #{tpu_custom_call.1} parent=47 // pred_check_branch
          %393 = sbr.rel (%p391) target = $region60
        $region59: #{tpu_custom_call.1} parent=47 // pred_region
          %395 = dma.done %s387, 1024
        $region60: #{tpu_custom_call.1} parent=47 // pred_fallthru
          _
        %s396 = sand.u32 %s31, 1
        %s397 = scalar_lea.sflag [#allocation10], %s396
        %s398 = sand.u32 %s117, 1
        %s399 = smul.addr %s398, 64
        %s400 = scalar_lea.vmem [#allocation9], %s399
        // Predicated region
        $region61: #{tpu_custom_call.1} parent=47 // pred_check
          %p401 = pneg %p130
        $region62: #{tpu_custom_call.1} parent=47 // pred_check_branch
          %403 = sbr.rel (%p401) target = $region64
        $region63: #{tpu_custom_call.1} parent=47 // pred_region
          %405 = dma.done %s397, 1024
        $region64: #{tpu_custom_call.1} parent=47 // pred_fallthru
          _
        %s406 = sand.u32 %s31, 1
        %s407 = scalar_lea.sflag [#allocation10], %s406
        %s408 = sand.u32 %s143, 1
        %s409 = smul.addr %s408, 64
        %s410 = scalar_lea.vmem [#allocation11], %s409
        // Predicated region
        $region65: #{tpu_custom_call.1} parent=47 // pred_check
          %p411 = pneg %p156
        $region66: #{tpu_custom_call.1} parent=47 // pred_check_branch
          %413 = sbr.rel (%p411) target = $region68
        $region67: #{tpu_custom_call.1} parent=47 // pred_region
          %415 = dma.done %s407, 1024
        $region68: #{tpu_custom_call.1} parent=47 // pred_fallthru
          _
        %s416 = sand.u32 %s39, 1
        %s417 = scalar_lea.sflag [#allocation4], %s416
        %s418 = sand.u32 %s39, 1
        %s419 = smul.addr %s418, 64
        %s420 = scalar_lea.vmem [#allocation3], %s419
        %p421 = pneg %p52
        %p422 = pneg %p49
        %s423 = sand.u32 %s31, 1
        %s424 = scalar_lea.sflag [#allocation7], %s423
        %s425 = sand.u32 %s65, 1
        %s426 = smul.addr %s425, 64
        %s427 = scalar_lea.vmem [#allocation6], %s426
        %p428 = pneg %p78
        %p429 = pneg %p75
        %s430 = sand.u32 %s31, 1
        %s431 = scalar_lea.sflag [#allocation7], %s430
        %s432 = sand.u32 %s91, 1
        %s433 = smul.addr %s432, 64
        %s434 = scalar_lea.vmem [#allocation8], %s433
        %p435 = pneg %p104
        %p436 = pneg %p101
        %s437 = sand.u32 %s31, 1
        %s438 = scalar_lea.sflag [#allocation10], %s437
        %s439 = sand.u32 %s117, 1
        %s440 = smul.addr %s439, 64
        %s441 = scalar_lea.vmem [#allocation9], %s440
        %p442 = pneg %p130
        %p443 = pneg %p127
        %s444 = sand.u32 %s31, 1
        %s445 = scalar_lea.sflag [#allocation10], %s444
        %s446 = sand.u32 %s143, 1
        %s447 = smul.addr %s446, 64
        %s448 = scalar_lea.vmem [#allocation11], %s447
        %p449 = pneg %p156
        %p450 = pneg %p153
        %p451 = pneg %p177
        %p452 = pneg %p174
        %p453 = pneg %p198
        %p454 = pneg %p195
        %p455 = pneg %p224
        %p456 = pneg %p221
        %s457 = sand.u32 %s211, 1
        %s458 = scalar_lea.sflag [#allocation5], %s457
        %s459 = sand.u32 %s211, 1
        %s460 = smul.addr %s459, 64
        %s461 = scalar_lea.vmem [#allocation12], %s460
        %s462 = smul.u32 8, %s31
        %s463 = smul.u32 8, %s31
        %s464 = smul.u32 8, %s31
        %s465 = smul.u32 8, %s31
        %s466 = smul.u32 8, %s31
        %s467 = smul.u32 8, %s31
        %s468 = sld [smem:[#allocation2]]
        %v469 = vld [vmem:[%s5] sm:$0x1]
        %v471 = vperm.slane %v469, 0
        %v473 = vld [vmem:[%s410] sm:$0xff]
        %v474 = vld [vmem:[%s410 + $0x8] sm:$0xff]
        %v475 = vld [vmem:[%s410 + $0x10] sm:$0xff]
        %v476 = vld [vmem:[%s410 + $0x18] sm:$0xff]
        %v477 = vld [vmem:[%s410 + $0x20] sm:$0xff]
        %v478 = vld [vmem:[%s410 + $0x28] sm:$0xff]
        %v479 = vld [vmem:[%s410 + $0x30] sm:$0xff]
        %v480 = vld [vmem:[%s410 + $0x38] sm:$0xff]
        %v481 = vmul.f32 %v473, %v471
        %v482 = vmul.f32 %v474, %v471
        %v483 = vmul.f32 %v475, %v471
        %v484 = vmul.f32 %v476, %v471
        %v485 = vmul.f32 %v477, %v471
        %v486 = vmul.f32 %v478, %v471
        %v487 = vmul.f32 %v479, %v471
        %v488 = vmul.f32 %v480, %v471
        %489 = vadd.xlane.f32.xlu0 %v481
        %v490 = vpop.xlane.xlu0 %489
        %491 = vadd.xlane.f32.xlu0 %v482
        %v492 = vpop.xlane.xlu0 %491
        %493 = vadd.xlane.f32.xlu0 %v483
        %v494 = vpop.xlane.xlu0 %493
        %495 = vadd.xlane.f32.xlu0 %v484
        %v496 = vpop.xlane.xlu0 %495
        %497 = vadd.xlane.f32.xlu0 %v485
        %v498 = vpop.xlane.xlu0 %497
        %499 = vadd.xlane.f32.xlu0 %v486
        %v500 = vpop.xlane.xlu0 %499
        %501 = vadd.xlane.f32.xlu0 %v487
        %v502 = vpop.xlane.xlu0 %501
        %503 = vadd.xlane.f32.xlu0 %v488
        %v504 = vpop.xlane.xlu0 %503
        %v505 = vstv %s468
        %v506 = vadd.f32 %v490, %v505
        %v507 = vadd.f32 %v492, %v505
        %v508 = vadd.f32 %v494, %v505
        %v509 = vadd.f32 %v496, %v505
        %v510 = vadd.f32 %v498, %v505
        %v511 = vadd.f32 %v500, %v505
        %v512 = vadd.f32 %v502, %v505
        %v513 = vadd.f32 %v504, %v505
        %v514 = vld [vmem:[%s370] sm:$0xff]
        %v515 = vld [vmem:[%s370 + $0x8] sm:$0xff]
        %v516 = vld [vmem:[%s370 + $0x10] sm:$0xff]
        %v517 = vld [vmem:[%s370 + $0x18] sm:$0xff]
        %v518 = vld [vmem:[%s370 + $0x20] sm:$0xff]
        %v519 = vld [vmem:[%s370 + $0x28] sm:$0xff]
        %v520 = vld [vmem:[%s370 + $0x30] sm:$0xff]
        %v521 = vld [vmem:[%s370 + $0x38] sm:$0xff]
        %v522 = vmul.f32 %v514, %v471
        %v523 = vmul.f32 %v515, %v471
        %v524 = vmul.f32 %v516, %v471
        %v525 = vmul.f32 %v517, %v471
        %v526 = vmul.f32 %v518, %v471
        %v527 = vmul.f32 %v519, %v471
        %v528 = vmul.f32 %v520, %v471
        %v529 = vmul.f32 %v521, %v471
        %530 = vadd.xlane.f32.xlu0 %v522
        %v531 = vpop.xlane.xlu0 %530
        %532 = vadd.xlane.f32.xlu0 %v523
        %v533 = vpop.xlane.xlu0 %532
        %534 = vadd.xlane.f32.xlu0 %v524
        %v535 = vpop.xlane.xlu0 %534
        %536 = vadd.xlane.f32.xlu0 %v525
        %v537 = vpop.xlane.xlu0 %536
        %538 = vadd.xlane.f32.xlu0 %v526
        %v539 = vpop.xlane.xlu0 %538
        %540 = vadd.xlane.f32.xlu0 %v527
        %v541 = vpop.xlane.xlu0 %540
        %542 = vadd.xlane.f32.xlu0 %v528
        %v543 = vpop.xlane.xlu0 %542
        %544 = vadd.xlane.f32.xlu0 %v529
        %v545 = vpop.xlane.xlu0 %544
        %v546 = vadd.f32 %v531, %v506
        %v547 = vadd.f32 %v533, %v507
        %v548 = vadd.f32 %v535, %v508
        %v549 = vadd.f32 %v537, %v509
        %v550 = vadd.f32 %v539, %v510
        %v551 = vadd.f32 %v541, %v511
        %v552 = vadd.f32 %v543, %v512
        %v553 = vadd.f32 %v545, %v513
        %v554 = vxor.u32 %v546, 2147483648
        %v555 = vxor.u32 %v547, 2147483648
        %v556 = vxor.u32 %v548, 2147483648
        %v557 = vxor.u32 %v549, 2147483648
        %v558 = vxor.u32 %v550, 2147483648
        %v559 = vxor.u32 %v551, 2147483648
        %v560 = vxor.u32 %v552, 2147483648
        %v561 = vxor.u32 %v553, 2147483648
        %v562 = vmul.f32 %v554, 1.442695
        %v563 = vpow.pop %v562
        %v564 = vmul.f32 %v555, 1.442695
        %v565 = vpow.pop %v564
        %v566 = vmul.f32 %v556, 1.442695
        %v567 = vpow.pop %v566
        %v568 = vmul.f32 %v557, 1.442695
        %v569 = vpow.pop %v568
        %v570 = vmul.f32 %v558, 1.442695
        %v571 = vpow.pop %v570
        %v572 = vmul.f32 %v559, 1.442695
        %v573 = vpow.pop %v572
        %v574 = vmul.f32 %v560, 1.442695
        %v575 = vpow.pop %v574
        %v576 = vmul.f32 %v561, 1.442695
        %v577 = vpow.pop %v576
        %v578 = vadd.f32 %v563, 1.0
        %v579 = vadd.f32 %v565, 1.0
        %v580 = vadd.f32 %v567, 1.0
        %v581 = vadd.f32 %v569, 1.0
        %v582 = vadd.f32 %v571, 1.0
        %v583 = vadd.f32 %v573, 1.0
        %v584 = vadd.f32 %v575, 1.0
        %v585 = vadd.f32 %v577, 1.0
        %v586 = vrcp.pop %v578
        %v587 = vmul.f32 %v578, %v586
        %v588 = vsub.f32 1.0, %v587
        %v589 = vmul.f32 %v586, %v588
        %v590 = vadd.f32 %v586, %v589
        %vm591 = vweird.f32 %v578
        %vm592 = vweird.f32 %v586
        %vm593 = vmor %vm591, %vm592
        %v594 = vsel %vm593, %v586, %v590
        %v595 = vand.u32 2147483647, %v578
        %vm596 = vcmp.eq.f32.partialorder %v595, 8.507059e+37
        %v597 = vand.u32 %v578, 2147483648
        %v598 = vor.u32 1.1754944e-38, %v597
        %v599 = vsel %vm596, %v598, %v594
        %v600 = vmul.f32 1.0, %v599
        %v601 = vrcp.pop %v579
        %v602 = vmul.f32 %v579, %v601
        %v603 = vsub.f32 1.0, %v602
        %v604 = vmul.f32 %v601, %v603
        %v605 = vadd.f32 %v601, %v604
        %vm606 = vweird.f32 %v579
        %vm607 = vweird.f32 %v601
        %vm608 = vmor %vm606, %vm607
        %v609 = vsel %vm608, %v601, %v605
        %v610 = vand.u32 2147483647, %v579
        %vm611 = vcmp.eq.f32.partialorder %v610, 8.507059e+37
        %v612 = vand.u32 %v579, 2147483648
        %v613 = vor.u32 1.1754944e-38, %v612
        %v614 = vsel %vm611, %v613, %v609
        %v615 = vmul.f32 1.0, %v614
        %v616 = vrcp.pop %v580
        %v617 = vmul.f32 %v580, %v616
        %v618 = vsub.f32 1.0, %v617
        %v619 = vmul.f32 %v616, %v618
        %v620 = vadd.f32 %v616, %v619
        %vm621 = vweird.f32 %v580
        %vm622 = vweird.f32 %v616
        %vm623 = vmor %vm621, %vm622
        %v624 = vsel %vm623, %v616, %v620
        %v625 = vand.u32 2147483647, %v580
        %vm626 = vcmp.eq.f32.partialorder %v625, 8.507059e+37
        %v627 = vand.u32 %v580, 2147483648
        %v628 = vor.u32 1.1754944e-38, %v627
        %v629 = vsel %vm626, %v628, %v624
        %v630 = vmul.f32 1.0, %v629
        %v631 = vrcp.pop %v581
        %v632 = vmul.f32 %v581, %v631
        %v633 = vsub.f32 1.0, %v632
        %v634 = vmul.f32 %v631, %v633
        %v635 = vadd.f32 %v631, %v634
        %vm636 = vweird.f32 %v581
        %vm637 = vweird.f32 %v631
        %vm638 = vmor %vm636, %vm637
        %v639 = vsel %vm638, %v631, %v635
        %v640 = vand.u32 2147483647, %v581
        %vm641 = vcmp.eq.f32.partialorder %v640, 8.507059e+37
        %v642 = vand.u32 %v581, 2147483648
        %v643 = vor.u32 1.1754944e-38, %v642
        %v644 = vsel %vm641, %v643, %v639
        %v645 = vmul.f32 1.0, %v644
        %v646 = vrcp.pop %v582
        %v647 = vmul.f32 %v582, %v646
        %v648 = vsub.f32 1.0, %v647
        %v649 = vmul.f32 %v646, %v648
        %v650 = vadd.f32 %v646, %v649
        %vm651 = vweird.f32 %v582
        %vm652 = vweird.f32 %v646
        %vm653 = vmor %vm651, %vm652
        %v654 = vsel %vm653, %v646, %v650
        %v655 = vand.u32 2147483647, %v582
        %vm656 = vcmp.eq.f32.partialorder %v655, 8.507059e+37
        %v657 = vand.u32 %v582, 2147483648
        %v658 = vor.u32 1.1754944e-38, %v657
        %v659 = vsel %vm656, %v658, %v654
        %v660 = vmul.f32 1.0, %v659
        %v661 = vrcp.pop %v583
        %v662 = vmul.f32 %v583, %v661
        %v663 = vsub.f32 1.0, %v662
        %v664 = vmul.f32 %v661, %v663
        %v665 = vadd.f32 %v661, %v664
        %vm666 = vweird.f32 %v583
        %vm667 = vweird.f32 %v661
        %vm668 = vmor %vm666, %vm667
        %v669 = vsel %vm668, %v661, %v665
        %v670 = vand.u32 2147483647, %v583
        %vm671 = vcmp.eq.f32.partialorder %v670, 8.507059e+37
        %v672 = vand.u32 %v583, 2147483648
        %v673 = vor.u32 1.1754944e-38, %v672
        %v674 = vsel %vm671, %v673, %v669
        %v675 = vmul.f32 1.0, %v674
        %v676 = vrcp.pop %v584
        %v677 = vmul.f32 %v584, %v676
        %v678 = vsub.f32 1.0, %v677
        %v679 = vmul.f32 %v676, %v678
        %v680 = vadd.f32 %v676, %v679
        %vm681 = vweird.f32 %v584
        %vm682 = vweird.f32 %v676
        %vm683 = vmor %vm681, %vm682
        %v684 = vsel %vm683, %v676, %v680
        %v685 = vand.u32 2147483647, %v584
        %vm686 = vcmp.eq.f32.partialorder %v685, 8.507059e+37
        %v687 = vand.u32 %v584, 2147483648
        %v688 = vor.u32 1.1754944e-38, %v687
        %v689 = vsel %vm686, %v688, %v684
        %v690 = vmul.f32 1.0, %v689
        %v691 = vrcp.pop %v585
        %v692 = vmul.f32 %v585, %v691
        %v693 = vsub.f32 1.0, %v692
        %v694 = vmul.f32 %v691, %v693
        %v695 = vadd.f32 %v691, %v694
        %vm696 = vweird.f32 %v585
        %vm697 = vweird.f32 %v691
        %vm698 = vmor %vm696, %vm697
        %v699 = vsel %vm698, %v691, %v695
        %v700 = vand.u32 2147483647, %v585
        %vm701 = vcmp.eq.f32.partialorder %v700, 8.507059e+37
        %v702 = vand.u32 %v585, 2147483648
        %v703 = vor.u32 1.1754944e-38, %v702
        %v704 = vsel %vm701, %v703, %v699
        %v705 = vmul.f32 1.0, %v704
        %v706 = vadd.f32 %v600, 0.0
        %v707 = vadd.f32 %v615, 0.0
        %v708 = vadd.f32 %v630, 0.0
        %v709 = vadd.f32 %v645, 0.0
        %v710 = vadd.f32 %v660, 0.0
        %v711 = vadd.f32 %v675, 0.0
        %v712 = vadd.f32 %v690, 0.0
        %v713 = vadd.f32 %v705, 0.0
        %v714 = vsub.f32 %v706, 0.99
        %v715 = vsub.f32 %v707, 0.99
        %v716 = vsub.f32 %v708, 0.99
        %v717 = vsub.f32 %v709, 0.99
        %v718 = vsub.f32 %v710, 0.99
        %v719 = vsub.f32 %v711, 0.99
        %v720 = vsub.f32 %v712, 0.99
        %v721 = vsub.f32 %v713, 0.99
        %v722 = vmax.f32 %v714, 0.0
        %v723 = vmax.f32 %v715, 0.0
        %v724 = vmax.f32 %v716, 0.0
        %v725 = vmax.f32 %v717, 0.0
        %v726 = vmax.f32 %v718, 0.0
        %v727 = vmax.f32 %v719, 0.0
        %v728 = vmax.f32 %v720, 0.0
        %v729 = vmax.f32 %v721, 0.0
        %v730 = vsub.f32 %v600, %v722
        %v731 = vsub.f32 %v615, %v723
        %v732 = vsub.f32 %v630, %v724
        %v733 = vsub.f32 %v645, %v725
        %v734 = vsub.f32 %v660, %v726
        %v735 = vsub.f32 %v675, %v727
        %v736 = vsub.f32 %v690, %v728
        %v737 = vsub.f32 %v705, %v729
        %v738 = vadd.f32 %v730, 0.0
        %v739 = vadd.f32 %v731, 0.0
        %v740 = vadd.f32 %v732, 0.0
        %v741 = vadd.f32 %v733, 0.0
        %v742 = vadd.f32 %v734, 0.0
        %v743 = vadd.f32 %v735, 0.0
        %v744 = vadd.f32 %v736, 0.0
        %v745 = vadd.f32 %v737, 0.0
        %v746 = vld [vmem:[%s380] sm:$0xff]
        %v747 = vld [vmem:[%s380 + $0x8] sm:$0xff]
        %v748 = vld [vmem:[%s380 + $0x10] sm:$0xff]
        %v749 = vld [vmem:[%s380 + $0x18] sm:$0xff]
        %v750 = vld [vmem:[%s380 + $0x20] sm:$0xff]
        %v751 = vld [vmem:[%s380 + $0x28] sm:$0xff]
        %v752 = vld [vmem:[%s380 + $0x30] sm:$0xff]
        %v753 = vld [vmem:[%s380 + $0x38] sm:$0xff]
        %v754 = vmul.f32 %v746, %v471
        %v755 = vmul.f32 %v747, %v471
        %v756 = vmul.f32 %v748, %v471
        %v757 = vmul.f32 %v749, %v471
        %v758 = vmul.f32 %v750, %v471
        %v759 = vmul.f32 %v751, %v471
        %v760 = vmul.f32 %v752, %v471
        %v761 = vmul.f32 %v753, %v471
        %762 = vadd.xlane.f32.xlu0 %v754
        %v763 = vpop.xlane.xlu0 %762
        %764 = vadd.xlane.f32.xlu0 %v755
        %v765 = vpop.xlane.xlu0 %764
        %766 = vadd.xlane.f32.xlu0 %v756
        %v767 = vpop.xlane.xlu0 %766
        %768 = vadd.xlane.f32.xlu0 %v757
        %v769 = vpop.xlane.xlu0 %768
        %770 = vadd.xlane.f32.xlu0 %v758
        %v771 = vpop.xlane.xlu0 %770
        %772 = vadd.xlane.f32.xlu0 %v759
        %v773 = vpop.xlane.xlu0 %772
        %774 = vadd.xlane.f32.xlu0 %v760
        %v775 = vpop.xlane.xlu0 %774
        %776 = vadd.xlane.f32.xlu0 %v761
        %v777 = vpop.xlane.xlu0 %776
        %v778 = vadd.f32 %v763, %v506
        %v779 = vadd.f32 %v765, %v507
        %v780 = vadd.f32 %v767, %v508
        %v781 = vadd.f32 %v769, %v509
        %v782 = vadd.f32 %v771, %v510
        %v783 = vadd.f32 %v773, %v511
        %v784 = vadd.f32 %v775, %v512
        %v785 = vadd.f32 %v777, %v513
        %v786 = vxor.u32 %v778, 2147483648
        %v787 = vxor.u32 %v779, 2147483648
        %v788 = vxor.u32 %v780, 2147483648
        %v789 = vxor.u32 %v781, 2147483648
        %v790 = vxor.u32 %v782, 2147483648
        %v791 = vxor.u32 %v783, 2147483648
        %v792 = vxor.u32 %v784, 2147483648
        %v793 = vxor.u32 %v785, 2147483648
        %v794 = vmul.f32 %v786, 1.442695
        %v795 = vpow.pop %v794
        %v796 = vmul.f32 %v787, 1.442695
        %v797 = vpow.pop %v796
        %v798 = vmul.f32 %v788, 1.442695
        %v799 = vpow.pop %v798
        %v800 = vmul.f32 %v789, 1.442695
        %v801 = vpow.pop %v800
        %v802 = vmul.f32 %v790, 1.442695
        %v803 = vpow.pop %v802
        %v804 = vmul.f32 %v791, 1.442695
        %v805 = vpow.pop %v804
        %v806 = vmul.f32 %v792, 1.442695
        %v807 = vpow.pop %v806
        %v808 = vmul.f32 %v793, 1.442695
        %v809 = vpow.pop %v808
        %v810 = vadd.f32 %v795, 1.0
        %v811 = vadd.f32 %v797, 1.0
        %v812 = vadd.f32 %v799, 1.0
        %v813 = vadd.f32 %v801, 1.0
        %v814 = vadd.f32 %v803, 1.0
        %v815 = vadd.f32 %v805, 1.0
        %v816 = vadd.f32 %v807, 1.0
        %v817 = vadd.f32 %v809, 1.0
        %v818 = vrcp.pop %v810
        %v819 = vmul.f32 %v810, %v818
        %v820 = vsub.f32 1.0, %v819
        %v821 = vmul.f32 %v818, %v820
        %v822 = vadd.f32 %v818, %v821
        %vm823 = vweird.f32 %v810
        %vm824 = vweird.f32 %v818
        %vm825 = vmor %vm823, %vm824
        %v826 = vsel %vm825, %v818, %v822
        %v827 = vand.u32 2147483647, %v810
        %vm828 = vcmp.eq.f32.partialorder %v827, 8.507059e+37
        %v829 = vand.u32 %v810, 2147483648
        %v830 = vor.u32 1.1754944e-38, %v829
        %v831 = vsel %vm828, %v830, %v826
        %v832 = vmul.f32 1.0, %v831
        %v833 = vrcp.pop %v811
        %v834 = vmul.f32 %v811, %v833
        %v835 = vsub.f32 1.0, %v834
        %v836 = vmul.f32 %v833, %v835
        %v837 = vadd.f32 %v833, %v836
        %vm838 = vweird.f32 %v811
        %vm839 = vweird.f32 %v833
        %vm840 = vmor %vm838, %vm839
        %v841 = vsel %vm840, %v833, %v837
        %v842 = vand.u32 2147483647, %v811
        %vm843 = vcmp.eq.f32.partialorder %v842, 8.507059e+37
        %v844 = vand.u32 %v811, 2147483648
        %v845 = vor.u32 1.1754944e-38, %v844
        %v846 = vsel %vm843, %v845, %v841
        %v847 = vmul.f32 1.0, %v846
        %v848 = vrcp.pop %v812
        %v849 = vmul.f32 %v812, %v848
        %v850 = vsub.f32 1.0, %v849
        %v851 = vmul.f32 %v848, %v850
        %v852 = vadd.f32 %v848, %v851
        %vm853 = vweird.f32 %v812
        %vm854 = vweird.f32 %v848
        %vm855 = vmor %vm853, %vm854
        %v856 = vsel %vm855, %v848, %v852
        %v857 = vand.u32 2147483647, %v812
        %vm858 = vcmp.eq.f32.partialorder %v857, 8.507059e+37
        %v859 = vand.u32 %v812, 2147483648
        %v860 = vor.u32 1.1754944e-38, %v859
        %v861 = vsel %vm858, %v860, %v856
        %v862 = vmul.f32 1.0, %v861
        %v863 = vrcp.pop %v813
        %v864 = vmul.f32 %v813, %v863
        %v865 = vsub.f32 1.0, %v864
        %v866 = vmul.f32 %v863, %v865
        %v867 = vadd.f32 %v863, %v866
        %vm868 = vweird.f32 %v813
        %vm869 = vweird.f32 %v863
        %vm870 = vmor %vm868, %vm869
        %v871 = vsel %vm870, %v863, %v867
        %v872 = vand.u32 2147483647, %v813
        %vm873 = vcmp.eq.f32.partialorder %v872, 8.507059e+37
        %v874 = vand.u32 %v813, 2147483648
        %v875 = vor.u32 1.1754944e-38, %v874
        %v876 = vsel %vm873, %v875, %v871
        %v877 = vmul.f32 1.0, %v876
        %v878 = vrcp.pop %v814
        %v879 = vmul.f32 %v814, %v878
        %v880 = vsub.f32 1.0, %v879
        %v881 = vmul.f32 %v878, %v880
        %v882 = vadd.f32 %v878, %v881
        %vm883 = vweird.f32 %v814
        %vm884 = vweird.f32 %v878
        %vm885 = vmor %vm883, %vm884
        %v886 = vsel %vm885, %v878, %v882
        %v887 = vand.u32 2147483647, %v814
        %vm888 = vcmp.eq.f32.partialorder %v887, 8.507059e+37
        %v889 = vand.u32 %v814, 2147483648
        %v890 = vor.u32 1.1754944e-38, %v889
        %v891 = vsel %vm888, %v890, %v886
        %v892 = vmul.f32 1.0, %v891
        %v893 = vrcp.pop %v815
        %v894 = vmul.f32 %v815, %v893
        %v895 = vsub.f32 1.0, %v894
        %v896 = vmul.f32 %v893, %v895
        %v897 = vadd.f32 %v893, %v896
        %vm898 = vweird.f32 %v815
        %vm899 = vweird.f32 %v893
        %vm900 = vmor %vm898, %vm899
        %v901 = vsel %vm900, %v893, %v897
        %v902 = vand.u32 2147483647, %v815
        %vm903 = vcmp.eq.f32.partialorder %v902, 8.507059e+37
        %v904 = vand.u32 %v815, 2147483648
        %v905 = vor.u32 1.1754944e-38, %v904
        %v906 = vsel %vm903, %v905, %v901
        %v907 = vmul.f32 1.0, %v906
        %v908 = vrcp.pop %v816
        %v909 = vmul.f32 %v816, %v908
        %v910 = vsub.f32 1.0, %v909
        %v911 = vmul.f32 %v908, %v910
        %v912 = vadd.f32 %v908, %v911
        %vm913 = vweird.f32 %v816
        %vm914 = vweird.f32 %v908
        %vm915 = vmor %vm913, %vm914
        %v916 = vsel %vm915, %v908, %v912
        %v917 = vand.u32 2147483647, %v816
        %vm918 = vcmp.eq.f32.partialorder %v917, 8.507059e+37
        %v919 = vand.u32 %v816, 2147483648
        %v920 = vor.u32 1.1754944e-38, %v919
        %v921 = vsel %vm918, %v920, %v916
        %v922 = vmul.f32 1.0, %v921
        %v923 = vrcp.pop %v817
        %v924 = vmul.f32 %v817, %v923
        %v925 = vsub.f32 1.0, %v924
        %v926 = vmul.f32 %v923, %v925
        %v927 = vadd.f32 %v923, %v926
        %vm928 = vweird.f32 %v817
        %vm929 = vweird.f32 %v923
        %vm930 = vmor %vm928, %vm929
        %v931 = vsel %vm930, %v923, %v927
        %v932 = vand.u32 2147483647, %v817
        %vm933 = vcmp.eq.f32.partialorder %v932, 8.507059e+37
        %v934 = vand.u32 %v817, 2147483648
        %v935 = vor.u32 1.1754944e-38, %v934
        %v936 = vsel %vm933, %v935, %v931
        %v937 = vmul.f32 1.0, %v936
        %v938 = vadd.f32 %v738, %v832
        %v939 = vadd.f32 %v739, %v847
        %v940 = vadd.f32 %v740, %v862
        %v941 = vadd.f32 %v741, %v877
        %v942 = vadd.f32 %v742, %v892
        %v943 = vadd.f32 %v743, %v907
        %v944 = vadd.f32 %v744, %v922
        %v945 = vadd.f32 %v745, %v937
        %v946 = vsub.f32 %v938, 0.99
        %v947 = vsub.f32 %v939, 0.99
        %v948 = vsub.f32 %v940, 0.99
        %v949 = vsub.f32 %v941, 0.99
        %v950 = vsub.f32 %v942, 0.99
        %v951 = vsub.f32 %v943, 0.99
        %v952 = vsub.f32 %v944, 0.99
        %v953 = vsub.f32 %v945, 0.99
        %v954 = vmax.f32 %v946, 0.0
        %v955 = vmax.f32 %v947, 0.0
        %v956 = vmax.f32 %v948, 0.0
        %v957 = vmax.f32 %v949, 0.0
        %v958 = vmax.f32 %v950, 0.0
        %v959 = vmax.f32 %v951, 0.0
        %v960 = vmax.f32 %v952, 0.0
        %v961 = vmax.f32 %v953, 0.0
        %v962 = vsub.f32 %v832, %v954
        %v963 = vsub.f32 %v847, %v955
        %v964 = vsub.f32 %v862, %v956
        %v965 = vsub.f32 %v877, %v957
        %v966 = vsub.f32 %v892, %v958
        %v967 = vsub.f32 %v907, %v959
        %v968 = vsub.f32 %v922, %v960
        %v969 = vsub.f32 %v937, %v961
        %v970 = vadd.f32 %v738, %v962
        %v971 = vadd.f32 %v739, %v963
        %v972 = vadd.f32 %v740, %v964
        %v973 = vadd.f32 %v741, %v965
        %v974 = vadd.f32 %v742, %v966
        %v975 = vadd.f32 %v743, %v967
        %v976 = vadd.f32 %v744, %v968
        %v977 = vadd.f32 %v745, %v969
        %v978 = vld [vmem:[%s390] sm:$0xff]
        %v979 = vld [vmem:[%s390 + $0x8] sm:$0xff]
        %v980 = vld [vmem:[%s390 + $0x10] sm:$0xff]
        %v981 = vld [vmem:[%s390 + $0x18] sm:$0xff]
        %v982 = vld [vmem:[%s390 + $0x20] sm:$0xff]
        %v983 = vld [vmem:[%s390 + $0x28] sm:$0xff]
        %v984 = vld [vmem:[%s390 + $0x30] sm:$0xff]
        %v985 = vld [vmem:[%s390 + $0x38] sm:$0xff]
        %v986 = vmul.f32 %v978, %v471
        %v987 = vmul.f32 %v979, %v471
        %v988 = vmul.f32 %v980, %v471
        %v989 = vmul.f32 %v981, %v471
        %v990 = vmul.f32 %v982, %v471
        %v991 = vmul.f32 %v983, %v471
        %v992 = vmul.f32 %v984, %v471
        %v993 = vmul.f32 %v985, %v471
        %994 = vadd.xlane.f32.xlu0 %v986
        %v995 = vpop.xlane.xlu0 %994
        %996 = vadd.xlane.f32.xlu0 %v987
        %v997 = vpop.xlane.xlu0 %996
        %998 = vadd.xlane.f32.xlu0 %v988
        %v999 = vpop.xlane.xlu0 %998
        %1000 = vadd.xlane.f32.xlu0 %v989
        %v1001 = vpop.xlane.xlu0 %1000
        %1002 = vadd.xlane.f32.xlu0 %v990
        %v1003 = vpop.xlane.xlu0 %1002
        %1004 = vadd.xlane.f32.xlu0 %v991
        %v1005 = vpop.xlane.xlu0 %1004
        %1006 = vadd.xlane.f32.xlu0 %v992
        %v1007 = vpop.xlane.xlu0 %1006
        %1008 = vadd.xlane.f32.xlu0 %v993
        %v1009 = vpop.xlane.xlu0 %1008
        %v1010 = vadd.f32 %v995, %v506
        %v1011 = vadd.f32 %v997, %v507
        %v1012 = vadd.f32 %v999, %v508
        %v1013 = vadd.f32 %v1001, %v509
        %v1014 = vadd.f32 %v1003, %v510
        %v1015 = vadd.f32 %v1005, %v511
        %v1016 = vadd.f32 %v1007, %v512
        %v1017 = vadd.f32 %v1009, %v513
        %v1018 = vxor.u32 %v1010, 2147483648
        %v1019 = vxor.u32 %v1011, 2147483648
        %v1020 = vxor.u32 %v1012, 2147483648
        %v1021 = vxor.u32 %v1013, 2147483648
        %v1022 = vxor.u32 %v1014, 2147483648
        %v1023 = vxor.u32 %v1015, 2147483648
        %v1024 = vxor.u32 %v1016, 2147483648
        %v1025 = vxor.u32 %v1017, 2147483648
        %v1026 = vmul.f32 %v1018, 1.442695
        %v1027 = vpow.pop %v1026
        %v1028 = vmul.f32 %v1019, 1.442695
        %v1029 = vpow.pop %v1028
        %v1030 = vmul.f32 %v1020, 1.442695
        %v1031 = vpow.pop %v1030
        %v1032 = vmul.f32 %v1021, 1.442695
        %v1033 = vpow.pop %v1032
        %v1034 = vmul.f32 %v1022, 1.442695
        %v1035 = vpow.pop %v1034
        %v1036 = vmul.f32 %v1023, 1.442695
        %v1037 = vpow.pop %v1036
        %v1038 = vmul.f32 %v1024, 1.442695
        %v1039 = vpow.pop %v1038
        %v1040 = vmul.f32 %v1025, 1.442695
        %v1041 = vpow.pop %v1040
        %v1042 = vadd.f32 %v1027, 1.0
        %v1043 = vadd.f32 %v1029, 1.0
        %v1044 = vadd.f32 %v1031, 1.0
        %v1045 = vadd.f32 %v1033, 1.0
        %v1046 = vadd.f32 %v1035, 1.0
        %v1047 = vadd.f32 %v1037, 1.0
        %v1048 = vadd.f32 %v1039, 1.0
        %v1049 = vadd.f32 %v1041, 1.0
        %v1050 = vrcp.pop %v1042
        %v1051 = vmul.f32 %v1042, %v1050
        %v1052 = vsub.f32 1.0, %v1051
        %v1053 = vmul.f32 %v1050, %v1052
        %v1054 = vadd.f32 %v1050, %v1053
        %vm1055 = vweird.f32 %v1042
        %vm1056 = vweird.f32 %v1050
        %vm1057 = vmor %vm1055, %vm1056
        %v1058 = vsel %vm1057, %v1050, %v1054
        %v1059 = vand.u32 2147483647, %v1042
        %vm1060 = vcmp.eq.f32.partialorder %v1059, 8.507059e+37
        %v1061 = vand.u32 %v1042, 2147483648
        %v1062 = vor.u32 1.1754944e-38, %v1061
        %v1063 = vsel %vm1060, %v1062, %v1058
        %v1064 = vmul.f32 1.0, %v1063
        %v1065 = vrcp.pop %v1043
        %v1066 = vmul.f32 %v1043, %v1065
        %v1067 = vsub.f32 1.0, %v1066
        %v1068 = vmul.f32 %v1065, %v1067
        %v1069 = vadd.f32 %v1065, %v1068
        %vm1070 = vweird.f32 %v1043
        %vm1071 = vweird.f32 %v1065
        %vm1072 = vmor %vm1070, %vm1071
        %v1073 = vsel %vm1072, %v1065, %v1069
        %v1074 = vand.u32 2147483647, %v1043
        %vm1075 = vcmp.eq.f32.partialorder %v1074, 8.507059e+37
        %v1076 = vand.u32 %v1043, 2147483648
        %v1077 = vor.u32 1.1754944e-38, %v1076
        %v1078 = vsel %vm1075, %v1077, %v1073
        %v1079 = vmul.f32 1.0, %v1078
        %v1080 = vrcp.pop %v1044
        %v1081 = vmul.f32 %v1044, %v1080
        %v1082 = vsub.f32 1.0, %v1081
        %v1083 = vmul.f32 %v1080, %v1082
        %v1084 = vadd.f32 %v1080, %v1083
        %vm1085 = vweird.f32 %v1044
        %vm1086 = vweird.f32 %v1080
        %vm1087 = vmor %vm1085, %vm1086
        %v1088 = vsel %vm1087, %v1080, %v1084
        %v1089 = vand.u32 2147483647, %v1044
        %vm1090 = vcmp.eq.f32.partialorder %v1089, 8.507059e+37
        %v1091 = vand.u32 %v1044, 2147483648
        %v1092 = vor.u32 1.1754944e-38, %v1091
        %v1093 = vsel %vm1090, %v1092, %v1088
        %v1094 = vmul.f32 1.0, %v1093
        %v1095 = vrcp.pop %v1045
        %v1096 = vmul.f32 %v1045, %v1095
        %v1097 = vsub.f32 1.0, %v1096
        %v1098 = vmul.f32 %v1095, %v1097
        %v1099 = vadd.f32 %v1095, %v1098
        %vm1100 = vweird.f32 %v1045
        %vm1101 = vweird.f32 %v1095
        %vm1102 = vmor %vm1100, %vm1101
        %v1103 = vsel %vm1102, %v1095, %v1099
        %v1104 = vand.u32 2147483647, %v1045
        %vm1105 = vcmp.eq.f32.partialorder %v1104, 8.507059e+37
        %v1106 = vand.u32 %v1045, 2147483648
        %v1107 = vor.u32 1.1754944e-38, %v1106
        %v1108 = vsel %vm1105, %v1107, %v1103
        %v1109 = vmul.f32 1.0, %v1108
        %v1110 = vrcp.pop %v1046
        %v1111 = vmul.f32 %v1046, %v1110
        %v1112 = vsub.f32 1.0, %v1111
        %v1113 = vmul.f32 %v1110, %v1112
        %v1114 = vadd.f32 %v1110, %v1113
        %vm1115 = vweird.f32 %v1046
        %vm1116 = vweird.f32 %v1110
        %vm1117 = vmor %vm1115, %vm1116
        %v1118 = vsel %vm1117, %v1110, %v1114
        %v1119 = vand.u32 2147483647, %v1046
        %vm1120 = vcmp.eq.f32.partialorder %v1119, 8.507059e+37
        %v1121 = vand.u32 %v1046, 2147483648
        %v1122 = vor.u32 1.1754944e-38, %v1121
        %v1123 = vsel %vm1120, %v1122, %v1118
        %v1124 = vmul.f32 1.0, %v1123
        %v1125 = vrcp.pop %v1047
        %v1126 = vmul.f32 %v1047, %v1125
        %v1127 = vsub.f32 1.0, %v1126
        %v1128 = vmul.f32 %v1125, %v1127
        %v1129 = vadd.f32 %v1125, %v1128
        %vm1130 = vweird.f32 %v1047
        %vm1131 = vweird.f32 %v1125
        %vm1132 = vmor %vm1130, %vm1131
        %v1133 = vsel %vm1132, %v1125, %v1129
        %v1134 = vand.u32 2147483647, %v1047
        %vm1135 = vcmp.eq.f32.partialorder %v1134, 8.507059e+37
        %v1136 = vand.u32 %v1047, 2147483648
        %v1137 = vor.u32 1.1754944e-38, %v1136
        %v1138 = vsel %vm1135, %v1137, %v1133
        %v1139 = vmul.f32 1.0, %v1138
        %v1140 = vrcp.pop %v1048
        %v1141 = vmul.f32 %v1048, %v1140
        %v1142 = vsub.f32 1.0, %v1141
        %v1143 = vmul.f32 %v1140, %v1142
        %v1144 = vadd.f32 %v1140, %v1143
        %vm1145 = vweird.f32 %v1048
        %vm1146 = vweird.f32 %v1140
        %vm1147 = vmor %vm1145, %vm1146
        %v1148 = vsel %vm1147, %v1140, %v1144
        %v1149 = vand.u32 2147483647, %v1048
        %vm1150 = vcmp.eq.f32.partialorder %v1149, 8.507059e+37
        %v1151 = vand.u32 %v1048, 2147483648
        %v1152 = vor.u32 1.1754944e-38, %v1151
        %v1153 = vsel %vm1150, %v1152, %v1148
        %v1154 = vmul.f32 1.0, %v1153
        %v1155 = vrcp.pop %v1049
        %v1156 = vmul.f32 %v1049, %v1155
        %v1157 = vsub.f32 1.0, %v1156
        %v1158 = vmul.f32 %v1155, %v1157
        %v1159 = vadd.f32 %v1155, %v1158
        %vm1160 = vweird.f32 %v1049
        %vm1161 = vweird.f32 %v1155
        %vm1162 = vmor %vm1160, %vm1161
        %v1163 = vsel %vm1162, %v1155, %v1159
        %v1164 = vand.u32 2147483647, %v1049
        %vm1165 = vcmp.eq.f32.partialorder %v1164, 8.507059e+37
        %v1166 = vand.u32 %v1049, 2147483648
        %v1167 = vor.u32 1.1754944e-38, %v1166
        %v1168 = vsel %vm1165, %v1167, %v1163
        %v1169 = vmul.f32 1.0, %v1168
        %v1170 = vadd.f32 %v970, %v1064
        %v1171 = vadd.f32 %v971, %v1079
        %v1172 = vadd.f32 %v972, %v1094
        %v1173 = vadd.f32 %v973, %v1109
        %v1174 = vadd.f32 %v974, %v1124
        %v1175 = vadd.f32 %v975, %v1139
        %v1176 = vadd.f32 %v976, %v1154
        %v1177 = vadd.f32 %v977, %v1169
        %v1178 = vsub.f32 %v1170, 0.99
        %v1179 = vsub.f32 %v1171, 0.99
        %v1180 = vsub.f32 %v1172, 0.99
        %v1181 = vsub.f32 %v1173, 0.99
        %v1182 = vsub.f32 %v1174, 0.99
        %v1183 = vsub.f32 %v1175, 0.99
        %v1184 = vsub.f32 %v1176, 0.99
        %v1185 = vsub.f32 %v1177, 0.99
        %v1186 = vmax.f32 %v1178, 0.0
        %v1187 = vmax.f32 %v1179, 0.0
        %v1188 = vmax.f32 %v1180, 0.0
        %v1189 = vmax.f32 %v1181, 0.0
        %v1190 = vmax.f32 %v1182, 0.0
        %v1191 = vmax.f32 %v1183, 0.0
        %v1192 = vmax.f32 %v1184, 0.0
        %v1193 = vmax.f32 %v1185, 0.0
        %v1194 = vsub.f32 %v1064, %v1186
        %v1195 = vsub.f32 %v1079, %v1187
        %v1196 = vsub.f32 %v1094, %v1188
        %v1197 = vsub.f32 %v1109, %v1189
        %v1198 = vsub.f32 %v1124, %v1190
        %v1199 = vsub.f32 %v1139, %v1191
        %v1200 = vsub.f32 %v1154, %v1192
        %v1201 = vsub.f32 %v1169, %v1193
        %v1202 = vadd.f32 %v970, %v1194
        %v1203 = vadd.f32 %v971, %v1195
        %v1204 = vadd.f32 %v972, %v1196
        %v1205 = vadd.f32 %v973, %v1197
        %v1206 = vadd.f32 %v974, %v1198
        %v1207 = vadd.f32 %v975, %v1199
        %v1208 = vadd.f32 %v976, %v1200
        %v1209 = vadd.f32 %v977, %v1201
        %v1210 = vsub.f32 0.99, %v1202
        %v1211 = vsub.f32 0.99, %v1203
        %v1212 = vsub.f32 0.99, %v1204
        %v1213 = vsub.f32 0.99, %v1205
        %v1214 = vsub.f32 0.99, %v1206
        %v1215 = vsub.f32 0.99, %v1207
        %v1216 = vsub.f32 0.99, %v1208
        %v1217 = vsub.f32 0.99, %v1209
        %v1218 = vmax.f32 %v1210, 0.0
        %v1219 = vmax.f32 %v1211, 0.0
        %v1220 = vmax.f32 %v1212, 0.0
        %v1221 = vmax.f32 %v1213, 0.0
        %v1222 = vmax.f32 %v1214, 0.0
        %v1223 = vmax.f32 %v1215, 0.0
        %v1224 = vmax.f32 %v1216, 0.0
        %v1225 = vmax.f32 %v1217, 0.0
        %v1226 = vmul.f32 %v730, %v730
        %v1227 = vmul.f32 %v731, %v731
        %v1228 = vmul.f32 %v732, %v732
        %v1229 = vmul.f32 %v733, %v733
        %v1230 = vmul.f32 %v734, %v734
        %v1231 = vmul.f32 %v735, %v735
        %v1232 = vmul.f32 %v736, %v736
        %v1233 = vmul.f32 %v737, %v737
        %v1234 = vmul.f32 %v1226, %v1226
        %v1235 = vmul.f32 %v1227, %v1227
        %v1236 = vmul.f32 %v1228, %v1228
        %v1237 = vmul.f32 %v1229, %v1229
        %v1238 = vmul.f32 %v1230, %v1230
        %v1239 = vmul.f32 %v1231, %v1231
        %v1240 = vmul.f32 %v1232, %v1232
        %v1241 = vmul.f32 %v1233, %v1233
        %v1242 = vmul.f32 %v1234, %v730
        %v1243 = vmul.f32 %v1235, %v731
        %v1244 = vmul.f32 %v1236, %v732
        %v1245 = vmul.f32 %v1237, %v733
        %v1246 = vmul.f32 %v1238, %v734
        %v1247 = vmul.f32 %v1239, %v735
        %v1248 = vmul.f32 %v1240, %v736
        %v1249 = vmul.f32 %v1241, %v737
        %v1250 = vmul.f32 %v962, %v962
        %v1251 = vmul.f32 %v963, %v963
        %v1252 = vmul.f32 %v964, %v964
        %v1253 = vmul.f32 %v965, %v965
        %v1254 = vmul.f32 %v966, %v966
        %v1255 = vmul.f32 %v967, %v967
        %v1256 = vmul.f32 %v968, %v968
        %v1257 = vmul.f32 %v969, %v969
        %v1258 = vmul.f32 %v1250, %v1250
        %v1259 = vmul.f32 %v1251, %v1251
        %v1260 = vmul.f32 %v1252, %v1252
        %v1261 = vmul.f32 %v1253, %v1253
        %v1262 = vmul.f32 %v1254, %v1254
        %v1263 = vmul.f32 %v1255, %v1255
        %v1264 = vmul.f32 %v1256, %v1256
        %v1265 = vmul.f32 %v1257, %v1257
        %v1266 = vmul.f32 %v1258, %v962
        %v1267 = vmul.f32 %v1259, %v963
        %v1268 = vmul.f32 %v1260, %v964
        %v1269 = vmul.f32 %v1261, %v965
        %v1270 = vmul.f32 %v1262, %v966
        %v1271 = vmul.f32 %v1263, %v967
        %v1272 = vmul.f32 %v1264, %v968
        %v1273 = vmul.f32 %v1265, %v969
        %v1274 = vmul.f32 %v1194, %v1194
        %v1275 = vmul.f32 %v1195, %v1195
        %v1276 = vmul.f32 %v1196, %v1196
        %v1277 = vmul.f32 %v1197, %v1197
        %v1278 = vmul.f32 %v1198, %v1198
        %v1279 = vmul.f32 %v1199, %v1199
        %v1280 = vmul.f32 %v1200, %v1200
        %v1281 = vmul.f32 %v1201, %v1201
        %v1282 = vmul.f32 %v1274, %v1274
        %v1283 = vmul.f32 %v1275, %v1275
        %v1284 = vmul.f32 %v1276, %v1276
        %v1285 = vmul.f32 %v1277, %v1277
        %v1286 = vmul.f32 %v1278, %v1278
        %v1287 = vmul.f32 %v1279, %v1279
        %v1288 = vmul.f32 %v1280, %v1280
        %v1289 = vmul.f32 %v1281, %v1281
        %v1290 = vmul.f32 %v1282, %v1194
        %v1291 = vmul.f32 %v1283, %v1195
        %v1292 = vmul.f32 %v1284, %v1196
        %v1293 = vmul.f32 %v1285, %v1197
        %v1294 = vmul.f32 %v1286, %v1198
        %v1295 = vmul.f32 %v1287, %v1199
        %v1296 = vmul.f32 %v1288, %v1200
        %v1297 = vmul.f32 %v1289, %v1201
        %v1298 = vmul.f32 %v1218, %v1218
        %v1299 = vmul.f32 %v1219, %v1219
        %v1300 = vmul.f32 %v1220, %v1220
        %v1301 = vmul.f32 %v1221, %v1221
        %v1302 = vmul.f32 %v1222, %v1222
        %v1303 = vmul.f32 %v1223, %v1223
        %v1304 = vmul.f32 %v1224, %v1224
        %v1305 = vmul.f32 %v1225, %v1225
        %v1306 = vmul.f32 %v1298, %v1298
        %v1307 = vmul.f32 %v1299, %v1299
        %v1308 = vmul.f32 %v1300, %v1300
        %v1309 = vmul.f32 %v1301, %v1301
        %v1310 = vmul.f32 %v1302, %v1302
        %v1311 = vmul.f32 %v1303, %v1303
        %v1312 = vmul.f32 %v1304, %v1304
        %v1313 = vmul.f32 %v1305, %v1305
        %v1314 = vmul.f32 %v1306, %v1218
        %v1315 = vmul.f32 %v1307, %v1219
        %v1316 = vmul.f32 %v1308, %v1220
        %v1317 = vmul.f32 %v1309, %v1221
        %v1318 = vmul.f32 %v1310, %v1222
        %v1319 = vmul.f32 %v1311, %v1223
        %v1320 = vmul.f32 %v1312, %v1224
        %v1321 = vmul.f32 %v1313, %v1225
        %v1322 = vadd.f32 %v1242, %v1266
        %v1323 = vadd.f32 %v1243, %v1267
        %v1324 = vadd.f32 %v1244, %v1268
        %v1325 = vadd.f32 %v1245, %v1269
        %v1326 = vadd.f32 %v1246, %v1270
        %v1327 = vadd.f32 %v1247, %v1271
        %v1328 = vadd.f32 %v1248, %v1272
        %v1329 = vadd.f32 %v1249, %v1273
        %v1330 = vadd.f32 %v1322, %v1290
        %v1331 = vadd.f32 %v1323, %v1291
        %v1332 = vadd.f32 %v1324, %v1292
        %v1333 = vadd.f32 %v1325, %v1293
        %v1334 = vadd.f32 %v1326, %v1294
        %v1335 = vadd.f32 %v1327, %v1295
        %v1336 = vadd.f32 %v1328, %v1296
        %v1337 = vadd.f32 %v1329, %v1297
        %v1338 = vadd.f32 %v1330, %v1314
        %v1339 = vadd.f32 %v1331, %v1315
        %v1340 = vadd.f32 %v1332, %v1316
        %v1341 = vadd.f32 %v1333, %v1317
        %v1342 = vadd.f32 %v1334, %v1318
        %v1343 = vadd.f32 %v1335, %v1319
        %v1344 = vadd.f32 %v1336, %v1320
        %v1345 = vadd.f32 %v1337, %v1321
        %v1346 = vrcp.pop %v1338
        %v1347 = vmul.f32 %v1338, %v1346
        %v1348 = vsub.f32 1.0, %v1347
        %v1349 = vmul.f32 %v1346, %v1348
        %v1350 = vadd.f32 %v1346, %v1349
        %vm1351 = vweird.f32 %v1338
        %vm1352 = vweird.f32 %v1346
        %vm1353 = vmor %vm1351, %vm1352
        %v1354 = vsel %vm1353, %v1346, %v1350
        %v1355 = vand.u32 2147483647, %v1338
        %vm1356 = vcmp.eq.f32.partialorder %v1355, 8.507059e+37
        %v1357 = vand.u32 %v1338, 2147483648
        %v1358 = vor.u32 1.1754944e-38, %v1357
        %v1359 = vsel %vm1356, %v1358, %v1354
        %v1360 = vrcp.pop %v1339
        %v1361 = vmul.f32 %v1339, %v1360
        %v1362 = vsub.f32 1.0, %v1361
        %v1363 = vmul.f32 %v1360, %v1362
        %v1364 = vadd.f32 %v1360, %v1363
        %vm1365 = vweird.f32 %v1339
        %vm1366 = vweird.f32 %v1360
        %vm1367 = vmor %vm1365, %vm1366
        %v1368 = vsel %vm1367, %v1360, %v1364
        %v1369 = vand.u32 2147483647, %v1339
        %vm1370 = vcmp.eq.f32.partialorder %v1369, 8.507059e+37
        %v1371 = vand.u32 %v1339, 2147483648
        %v1372 = vor.u32 1.1754944e-38, %v1371
        %v1373 = vsel %vm1370, %v1372, %v1368
        %v1374 = vrcp.pop %v1340
        %v1375 = vmul.f32 %v1340, %v1374
        %v1376 = vsub.f32 1.0, %v1375
        %v1377 = vmul.f32 %v1374, %v1376
        %v1378 = vadd.f32 %v1374, %v1377
        %vm1379 = vweird.f32 %v1340
        %vm1380 = vweird.f32 %v1374
        %vm1381 = vmor %vm1379, %vm1380
        %v1382 = vsel %vm1381, %v1374, %v1378
        %v1383 = vand.u32 2147483647, %v1340
        %vm1384 = vcmp.eq.f32.partialorder %v1383, 8.507059e+37
        %v1385 = vand.u32 %v1340, 2147483648
        %v1386 = vor.u32 1.1754944e-38, %v1385
        %v1387 = vsel %vm1384, %v1386, %v1382
        %v1388 = vrcp.pop %v1341
        %v1389 = vmul.f32 %v1341, %v1388
        %v1390 = vsub.f32 1.0, %v1389
        %v1391 = vmul.f32 %v1388, %v1390
        %v1392 = vadd.f32 %v1388, %v1391
        %vm1393 = vweird.f32 %v1341
        %vm1394 = vweird.f32 %v1388
        %vm1395 = vmor %vm1393, %vm1394
        %v1396 = vsel %vm1395, %v1388, %v1392
        %v1397 = vand.u32 2147483647, %v1341
        %vm1398 = vcmp.eq.f32.partialorder %v1397, 8.507059e+37
        %v1399 = vand.u32 %v1341, 2147483648
        %v1400 = vor.u32 1.1754944e-38, %v1399
        %v1401 = vsel %vm1398, %v1400, %v1396
        %v1402 = vrcp.pop %v1342
        %v1403 = vmul.f32 %v1342, %v1402
        %v1404 = vsub.f32 1.0, %v1403
        %v1405 = vmul.f32 %v1402, %v1404
        %v1406 = vadd.f32 %v1402, %v1405
        %vm1407 = vweird.f32 %v1342
        %vm1408 = vweird.f32 %v1402
        %vm1409 = vmor %vm1407, %vm1408
        %v1410 = vsel %vm1409, %v1402, %v1406
        %v1411 = vand.u32 2147483647, %v1342
        %vm1412 = vcmp.eq.f32.partialorder %v1411, 8.507059e+37
        %v1413 = vand.u32 %v1342, 2147483648
        %v1414 = vor.u32 1.1754944e-38, %v1413
        %v1415 = vsel %vm1412, %v1414, %v1410
        %v1416 = vrcp.pop %v1343
        %v1417 = vmul.f32 %v1343, %v1416
        %v1418 = vsub.f32 1.0, %v1417
        %v1419 = vmul.f32 %v1416, %v1418
        %v1420 = vadd.f32 %v1416, %v1419
        %vm1421 = vweird.f32 %v1343
        %vm1422 = vweird.f32 %v1416
        %vm1423 = vmor %vm1421, %vm1422
        %v1424 = vsel %vm1423, %v1416, %v1420
        %v1425 = vand.u32 2147483647, %v1343
        %vm1426 = vcmp.eq.f32.partialorder %v1425, 8.507059e+37
        %v1427 = vand.u32 %v1343, 2147483648
        %v1428 = vor.u32 1.1754944e-38, %v1427
        %v1429 = vsel %vm1426, %v1428, %v1424
        %v1430 = vrcp.pop %v1344
        %v1431 = vmul.f32 %v1344, %v1430
        %v1432 = vsub.f32 1.0, %v1431
        %v1433 = vmul.f32 %v1430, %v1432
        %v1434 = vadd.f32 %v1430, %v1433
        %vm1435 = vweird.f32 %v1344
        %vm1436 = vweird.f32 %v1430
        %vm1437 = vmor %vm1435, %vm1436
        %v1438 = vsel %vm1437, %v1430, %v1434
        %v1439 = vand.u32 2147483647, %v1344
        %vm1440 = vcmp.eq.f32.partialorder %v1439, 8.507059e+37
        %v1441 = vand.u32 %v1344, 2147483648
        %v1442 = vor.u32 1.1754944e-38, %v1441
        %v1443 = vsel %vm1440, %v1442, %v1438
        %v1444 = vrcp.pop %v1345
        %v1445 = vmul.f32 %v1345, %v1444
        %v1446 = vsub.f32 1.0, %v1445
        %v1447 = vmul.f32 %v1444, %v1446
        %v1448 = vadd.f32 %v1444, %v1447
        %vm1449 = vweird.f32 %v1345
        %vm1450 = vweird.f32 %v1444
        %vm1451 = vmor %vm1449, %vm1450
        %v1452 = vsel %vm1451, %v1444, %v1448
        %v1453 = vand.u32 2147483647, %v1345
        %vm1454 = vcmp.eq.f32.partialorder %v1453, 8.507059e+37
        %v1455 = vand.u32 %v1345, 2147483648
        %v1456 = vor.u32 1.1754944e-38, %v1455
        %v1457 = vsel %vm1454, %v1456, %v1452
        %v1458 = vmul.f32 %v1242, %v1359
        %v1459 = vmul.f32 %v1243, %v1373
        %v1460 = vmul.f32 %v1244, %v1387
        %v1461 = vmul.f32 %v1245, %v1401
        %v1462 = vmul.f32 %v1246, %v1415
        %v1463 = vmul.f32 %v1247, %v1429
        %v1464 = vmul.f32 %v1248, %v1443
        %v1465 = vmul.f32 %v1249, %v1457
        %v1466 = vmul.f32 %v514, %v1458
        %v1467 = vmul.f32 %v515, %v1459
        %v1468 = vmul.f32 %v516, %v1460
        %v1469 = vmul.f32 %v517, %v1461
        %v1470 = vmul.f32 %v518, %v1462
        %v1471 = vmul.f32 %v519, %v1463
        %v1472 = vmul.f32 %v520, %v1464
        %v1473 = vmul.f32 %v521, %v1465
        %v1474 = vmul.f32 %v1266, %v1359
        %v1475 = vmul.f32 %v1267, %v1373
        %v1476 = vmul.f32 %v1268, %v1387
        %v1477 = vmul.f32 %v1269, %v1401
        %v1478 = vmul.f32 %v1270, %v1415
        %v1479 = vmul.f32 %v1271, %v1429
        %v1480 = vmul.f32 %v1272, %v1443
        %v1481 = vmul.f32 %v1273, %v1457
        %v1482 = vmul.f32 %v746, %v1474
        %v1483 = vmul.f32 %v747, %v1475
        %v1484 = vmul.f32 %v748, %v1476
        %v1485 = vmul.f32 %v749, %v1477
        %v1486 = vmul.f32 %v750, %v1478
        %v1487 = vmul.f32 %v751, %v1479
        %v1488 = vmul.f32 %v752, %v1480
        %v1489 = vmul.f32 %v753, %v1481
        %v1490 = vadd.f32 %v1466, %v1482
        %v1491 = vadd.f32 %v1467, %v1483
        %v1492 = vadd.f32 %v1468, %v1484
        %v1493 = vadd.f32 %v1469, %v1485
        %v1494 = vadd.f32 %v1470, %v1486
        %v1495 = vadd.f32 %v1471, %v1487
        %v1496 = vadd.f32 %v1472, %v1488
        %v1497 = vadd.f32 %v1473, %v1489
        %v1498 = vmul.f32 %v1290, %v1359
        %v1499 = vmul.f32 %v1291, %v1373
        %v1500 = vmul.f32 %v1292, %v1387
        %v1501 = vmul.f32 %v1293, %v1401
        %v1502 = vmul.f32 %v1294, %v1415
        %v1503 = vmul.f32 %v1295, %v1429
        %v1504 = vmul.f32 %v1296, %v1443
        %v1505 = vmul.f32 %v1297, %v1457
        %v1506 = vmul.f32 %v978, %v1498
        %v1507 = vmul.f32 %v979, %v1499
        %v1508 = vmul.f32 %v980, %v1500
        %v1509 = vmul.f32 %v981, %v1501
        %v1510 = vmul.f32 %v982, %v1502
        %v1511 = vmul.f32 %v983, %v1503
        %v1512 = vmul.f32 %v984, %v1504
        %v1513 = vmul.f32 %v985, %v1505
        %v1514 = vadd.f32 %v1490, %v1506
        %v1515 = vadd.f32 %v1491, %v1507
        %v1516 = vadd.f32 %v1492, %v1508
        %v1517 = vadd.f32 %v1493, %v1509
        %v1518 = vadd.f32 %v1494, %v1510
        %v1519 = vadd.f32 %v1495, %v1511
        %v1520 = vadd.f32 %v1496, %v1512
        %v1521 = vadd.f32 %v1497, %v1513
        %v1522 = vld [vmem:[%s400] sm:$0xff]
        %v1523 = vld [vmem:[%s400 + $0x8] sm:$0xff]
        %v1524 = vld [vmem:[%s400 + $0x10] sm:$0xff]
        %v1525 = vld [vmem:[%s400 + $0x18] sm:$0xff]
        %v1526 = vld [vmem:[%s400 + $0x20] sm:$0xff]
        %v1527 = vld [vmem:[%s400 + $0x28] sm:$0xff]
        %v1528 = vld [vmem:[%s400 + $0x30] sm:$0xff]
        %v1529 = vld [vmem:[%s400 + $0x38] sm:$0xff]
        %v1530 = vmul.f32 %v1314, %v1359
        %v1531 = vmul.f32 %v1315, %v1373
        %v1532 = vmul.f32 %v1316, %v1387
        %v1533 = vmul.f32 %v1317, %v1401
        %v1534 = vmul.f32 %v1318, %v1415
        %v1535 = vmul.f32 %v1319, %v1429
        %v1536 = vmul.f32 %v1320, %v1443
        %v1537 = vmul.f32 %v1321, %v1457
        %v1538 = vmul.f32 %v1522, %v1530
        %v1539 = vmul.f32 %v1523, %v1531
        %v1540 = vmul.f32 %v1524, %v1532
        %v1541 = vmul.f32 %v1525, %v1533
        %v1542 = vmul.f32 %v1526, %v1534
        %v1543 = vmul.f32 %v1527, %v1535
        %v1544 = vmul.f32 %v1528, %v1536
        %v1545 = vmul.f32 %v1529, %v1537
        %v1546 = vadd.f32 %v1514, %v1538
        %v1547 = vadd.f32 %v1515, %v1539
        %v1548 = vadd.f32 %v1516, %v1540
        %v1549 = vadd.f32 %v1517, %v1541
        %v1550 = vadd.f32 %v1518, %v1542
        %v1551 = vadd.f32 %v1519, %v1543
        %v1552 = vadd.f32 %v1520, %v1544
        %v1553 = vadd.f32 %v1521, %v1545
        %1554 = vst [vmem:[%s461] sm:$0xff] %v1546
        %1555 = vst [vmem:[%s461 + $0x8] sm:$0xff] %v1547
        %1556 = vst [vmem:[%s461 + $0x10] sm:$0xff] %v1548
        %1557 = vst [vmem:[%s461 + $0x18] sm:$0xff] %v1549
        %1558 = vst [vmem:[%s461 + $0x20] sm:$0xff] %v1550
        %1559 = vst [vmem:[%s461 + $0x28] sm:$0xff] %v1551
        %1560 = vst [vmem:[%s461 + $0x30] sm:$0xff] %v1552
        %1561 = vst [vmem:[%s461 + $0x38] sm:$0xff] %v1553
        %s1562 = sand.u32 %s211, 1
        %s1563 = scalar_lea.sflag [#allocation5], %s1562
        %s1564 = sand.u32 %s211, 1
        %s1565 = smul.addr %s1564, 64
        %s1566 = scalar_lea.vmem [#allocation12], %s1565
        // Predicated region
        $region69: #{tpu_custom_call.1} parent=47 // pred_check
          %p1567 = pneg %p221
        $region70: #{tpu_custom_call.1} parent=47 // pred_check_branch
          %1569 = sbr.rel (%p1567) target = $region72
        $region71: #{tpu_custom_call.1} parent=47 // pred_region
          %s1570 = smul.u32 8, %s31
          %1572 = vsyncadd %s1563, 0
          %s1573 = smul.addr %s1570, 8
          %s1574 = scalar_lea.hbm %s7, %s1573
          %s1575 = sshll.u32 %s1566, 4
          %s1576 = int_to_ptr.vmem [resolvable:$true] %s1575
          %s1577 = sshll.u32 %s1574, 4
          %s1578 = int_to_ptr.hbm [resolvable:$true] %s1577
          %1583 = dma.vmem_to_hbm [thread:$0]  %s1576, 1024, %s1578, %s1563, 128, 128, 8
        $region72: #{tpu_custom_call.1} parent=47 // pred_fallthru
          _
      $region48: #{tpu_custom_call.1} parent=5 // pred_fallthru
        _
      %p1584 = scmp.le.s32.totalorder 2, %s26
      // Predicated region
      $region73: #{tpu_custom_call.1} parent=5 // pred_check
        %p1585 = pneg %p1584
      $region74: #{tpu_custom_call.1} parent=5 // pred_check_branch
        %1587 = sbr.rel (%p1585) target = $region76
      $region75: #{tpu_custom_call.1} parent=5 // pred_region
        %s1588 = ssub.s32 %s26, 2
        // Predicated region
        $region77: #{tpu_custom_call.1} parent=75 // pred_check
          %p1589 = pneg %p227
        $region78: #{tpu_custom_call.1} parent=75 // pred_check_branch
          %1591 = sbr.rel (%p1589) target = $region80
        $region79: #{tpu_custom_call.1} parent=75 // pred_region
          %s1592 = sand.u32 %s212, 1
          %s1593 = scalar_lea.sflag [#allocation5], %s1592
          %s1594 = sand.u32 %s212, 1
          %s1595 = smul.addr %s1594, 64
          %s1596 = scalar_lea.vmem [#allocation12], %s1595
          %1598 = dma.done %s1593, 1024
        $region80: #{tpu_custom_call.1} parent=75 // pred_fallthru
          _
      $region76: #{tpu_custom_call.1} parent=5 // pred_fallthru
        _
    $region6: #{tpu_custom_call.1} parent=1 // loop_footer
      %s30 = sadd.s32 1, %s26
    $region7: #{tpu_custom_call.1} parent=1 // loop_footer_branch
      %25 = sbr.rel target = $region3
    $region8: #{tpu_custom_call.1} parent=1 // loop_exit
      _
    %1599 = vsyncpa [#allocation4], 1
    %s1600 = scalar_lea.sflag [#allocation4], 1
    %1601 = vsyncpa %s1600, 1
    %1602 = vsyncpa [#allocation7], 1
    %s1603 = scalar_lea.sflag [#allocation7], 1
    %1604 = vsyncpa %s1603, 1
    %1605 = vsyncpa [#allocation10], 1
    %s1606 = scalar_lea.sflag [#allocation10], 1
    %1607 = vsyncpa %s1606, 1
    %1608 = vsyncpa [#allocation5], 1
    %s1609 = scalar_lea.sflag [#allocation5], 1
    %1610 = vsyncpa %s1609, 1

</llo_original>
